<compile_context>
chip_gen: v7x
topology: tpu7x:2x2x1
jax: 0.10.0
libtpu: 0.0.40
codegen_flags: <defaults>
</compile_context>

<pallas_src>
import jax
import jax.numpy as jnp
import numpy as np
from jax import lax
from jax.experimental import pallas as pl
from jax.experimental.pallas import tpu as pltpu


def _make_kernel(H_out, W_out, Cin, KH, KW, d_h, d_w, s_h, s_w):
    """Kernel: fused im2col dilated conv + folded BatchNorm for one image."""

    def kernel(x_ref, w_ref, s_ref, b_ref, o_ref):
        x = x_ref[...]                       # (Hp, Wp, Cin), already padded

        # Build the KH*KW conv taps with static slices of the in-register value
        # (no scratch, no masked stores).  Stride handled via the slice step.
        taps = []
        for kh in range(KH):
            for kw in range(KW):
                h0 = kh * d_h
                w0 = kw * d_w
                taps.append(
                    x[h0:h0 + (H_out - 1) * s_h + 1:s_h,
                      w0:w0 + (W_out - 1) * s_w + 1:s_w, :])

        # im2col: (H_out, W_out, KH*KW*Cin) -> (H_out*W_out, KH*KW*Cin).
        # The leading-dim collapse is layout-preserving (W_out stays second-minor
        # multiple of the sublane tile in the example shapes).
        col = jnp.concatenate(taps, axis=-1)
        col = col.reshape(H_out * W_out, KH * KW * Cin)

        # Single MXU contraction, f32 accumulation.
        y = jnp.dot(col, w_ref[...], preferred_element_type=jnp.float32)

        # Folded BatchNorm (inference) + folded conv bias, in f32.
        y = y * s_ref[...] + b_ref[...]

        # Lane-dense store: last dim is Cout (a multiple of 128 in the example).
        o_ref[...] = y.astype(o_ref.dtype)

    return kernel


def conv2d_batchnorm(x_nchw, params, *, stride=1, padding=0, dilation=1,
                     compute_dtype=jnp.float32):
    """Forward pass of conv2DBatchNorm.  x_nchw: (N, Cin, H, W) PyTorch layout."""
    N, Cin, H, W = x_nchw.shape
    w_hwio = params['w_hwio']                      # (KH, KW, Cin, Cout)
    KH, KW, _, Cout = w_hwio.shape
    s_h = s_w = int(stride)
    p_h = p_w = int(padding)
    d_h = d_w = int(dilation)

    H_out = (H + 2 * p_h - d_h * (KH - 1) - 1) // s_h + 1
    W_out = (W + 2 * p_w - d_w * (KW - 1) - 1) // s_w + 1
    M = H_out * W_out
    K = KH * KW * Cin
    Hp, Wp = H + 2 * p_h, W + 2 * p_w

    # NCHW -> NHWC at the boundary; pad spatially here so the kernel needs no
    # padded scratch.  (Keep NHWC end-to-end in production - see TODO above.)
    x = jnp.transpose(x_nchw, (0, 2, 3, 1)).astype(compute_dtype)
    x_pad = jnp.pad(x, ((0, 0), (p_h, p_h), (p_w, p_w), (0, 0)))

    # Weight in im2col layout: row index = (kh*KW + kw)*Cin + cin.
    w_col = w_hwio.reshape(K, Cout).astype(compute_dtype)
    scale = params['scale'].reshape(1, Cout).astype(jnp.float32)
    bias = params['bias_eff'].reshape(1, Cout).astype(jnp.float32)

    kernel = _make_kernel(H_out, W_out, Cin, KH, KW, d_h, d_w, s_h, s_w)

    out_flat = pl.pallas_call(
        kernel,
        out_shape=jax.ShapeDtypeStruct((N, M, Cout), jnp.float32),
        grid=(N,),
        in_specs=[
            # padded image for batch n (leading dim squeezed away)
            pl.BlockSpec((pl.Squeezed(), Hp, Wp, Cin), lambda n: (n, 0, 0, 0)),
            pl.BlockSpec((K, Cout), lambda n: (0, 0)),   # im2col weight
            pl.BlockSpec((1, Cout), lambda n: (0, 0)),   # folded BN scale
            pl.BlockSpec((1, Cout), lambda n: (0, 0)),   # folded BN bias
        ],
        out_specs=pl.BlockSpec((pl.Squeezed(), M, Cout), lambda n: (n, 0, 0)),
        compiler_params=pltpu.CompilerParams(
            dimension_semantics=("parallel",)),          # shard batch on v7x TCs
    )(x_pad, w_col, scale, bias)

    # (N, H_out*W_out, Cout) -> NHWC (metadata reshape) -> NCHW for PyTorch API.
    return jnp.transpose(out_flat.reshape(N, H_out, W_out, Cout), (0, 3, 1, 2))


def init_params(key, in_ch, out_ch, kernel_size, bias=True):
    """Deterministic synthetic parameters: conv weight/bias + folded BN stats."""
    ks = jax.random.split(key, 6)
    eps = 1e-5

    w_oihw = 0.1 * jax.random.normal(
        ks[0], (out_ch, in_ch, kernel_size, kernel_size), dtype=jnp.float32)
    conv_b = (0.1 * jax.random.normal(ks[1], (out_ch,), dtype=jnp.float32)
              if bias else jnp.zeros((out_ch,), jnp.float32))
    gamma = 1.0 + 0.1 * jax.random.normal(ks[2], (out_ch,), dtype=jnp.float32)
    beta = 0.1 * jax.random.normal(ks[3], (out_ch,), dtype=jnp.float32)
    mean = 0.1 * jax.random.normal(ks[4], (out_ch,), dtype=jnp.float32)
    var = 0.5 + 0.5 * jnp.abs(jax.random.normal(ks[5], (out_ch,), dtype=jnp.float32))

    # Inference-mode BN fold: BN(conv(x)+b) = conv(x)*scale + bias_eff
    scale = gamma / jnp.sqrt(var + eps)
    bias_eff = beta + scale * (conv_b - mean)

    return {
        'w_hwio': jnp.transpose(w_oihw, (2, 3, 1, 0)).astype(jnp.float32),
        'conv_bias': conv_b, 'gamma': gamma, 'beta': beta,
        'mean': mean, 'var': var, 'eps': eps,
        'scale': scale.astype(jnp.float32),
        'bias_eff': bias_eff.astype(jnp.float32),
    }


def reference(x_nchw, params, *, stride, padding, dilation):
    """Pure-JAX (XLA conv) reference of the same forward pass."""
    x = jnp.transpose(x_nchw, (0, 2, 3, 1)).astype(jnp.float32)
    s, p, d = stride, padding, dilation
    y = lax.conv_general_dilated(
        x, params['w_hwio'], (s, s), [(p, p), (p, p)], rhs_dilation=(d, d),
        dimension_numbers=('NHWC', 'HWIO', 'NHWC'))
    y = y + params['conv_bias']
    y = ((y - params['mean']) / jnp.sqrt(params['var'] + params['eps'])
         * params['gamma'] + params['beta'])
    return jnp.transpose(y, (0, 3, 1, 2))


if __name__ == "__main__":
    key = jax.random.PRNGKey(0)
    kx, kp = jax.random.split(key)

    # Small but lane-friendly shapes: Cout=128 keeps the kernel's output stores
    # a full vreg lane width (dense vst), Cin=16 keeps the input small.
    N, Cin, Cout, H, W = 2, 16, 128, 16, 16
    kernel_size, stride, padding, dilation, bias = 3, 1, 2, 2, True

    x = jax.random.normal(kx, (N, Cin, H, W), dtype=jnp.float32)
    params = init_params(kp, Cin, Cout, kernel_size, bias=bias)
    ref = reference(x, params, stride=stride, padding=padding, dilation=dilation)

    # float32 compute path (exact check).
    out = conv2d_batchnorm(x, params, stride=stride, padding=padding,
                           dilation=dilation)
    out = jax.block_until_ready(out)
    np.testing.assert_allclose(np.asarray(out), np.asarray(ref),
                               rtol=1e-4, atol=1e-4)

    # bfloat16 compute path (v6e/v7x MXU-friendly; f32 accumulation/BN).
    out_bf16 = conv2d_batchnorm(x, params, stride=stride, padding=padding,
                                dilation=dilation, compute_dtype=jnp.bfloat16)
    out_bf16 = jax.block_until_ready(out_bf16)
    np.testing.assert_allclose(np.asarray(out_bf16), np.asarray(ref),
                               rtol=5e-2, atol=1e-1)

    print("KERNEL_OK")
</pallas_src>

<mosaic_0001>
module attributes {stable_mosaic.version = 11 : i64} {
  func.func @kernel(%arg0: i32, %arg1: memref<1x20x20x16xf32, #tpu.memory_space<vmem>>, %arg2: memref<144x128xf32, #tpu.memory_space<vmem>>, %arg3: memref<1x128xf32, #tpu.memory_space<vmem>>, %arg4: memref<1x128xf32, #tpu.memory_space<vmem>>, %arg5: memref<1x256x128xf32, #tpu.memory_space<vmem>>) attributes {dimension_semantics = [#tpu.dimension_semantics<parallel>], iteration_bounds = array<i64: 2>, scalar_prefetch = 0 : i64, scratch_operands = 0 : i64, tpu.core_type = #tpu.core_type<tc>, window_params = [{transform_indices = @transform_0, window_bounds = array<i64: 1, 20, 20, 16>}, {pipeline_mode = #tpu.pipeline_mode<synchronous>, transform_indices = @transform_1, window_bounds = array<i64: 144, 128>}, {pipeline_mode = #tpu.pipeline_mode<synchronous>, transform_indices = @transform_2, window_bounds = array<i64: 1, 128>}, {pipeline_mode = #tpu.pipeline_mode<synchronous>, transform_indices = @transform_3, window_bounds = array<i64: 1, 128>}, {transform_indices = @transform_4, window_bounds = array<i64: 1, 256, 128>}]} {
    %c0 = arith.constant 0 : index
    %c0_0 = arith.constant 0 : index
    %c0_1 = arith.constant 0 : index
    %c0_2 = arith.constant 0 : index
    %0 = vector.load %arg1[%c0, %c0_0, %c0_1, %c0_2] : memref<1x20x20x16xf32, #tpu.memory_space<vmem>>, vector<1x20x20x16xf32>
    %1 = vector.shape_cast %0 : vector<1x20x20x16xf32> to vector<20x20x16xf32>
    %2 = vector.extract_strided_slice %1 {offsets = [0, 0, 0], sizes = [16, 16, 16], strides = [1, 1, 1]} : vector<20x20x16xf32> to vector<16x16x16xf32>
    %3 = vector.extract_strided_slice %1 {offsets = [0, 2, 0], sizes = [16, 16, 16], strides = [1, 1, 1]} : vector<20x20x16xf32> to vector<16x16x16xf32>
    %4 = vector.extract_strided_slice %1 {offsets = [0, 4, 0], sizes = [16, 16, 16], strides = [1, 1, 1]} : vector<20x20x16xf32> to vector<16x16x16xf32>
    %5 = vector.extract_strided_slice %1 {offsets = [2, 0, 0], sizes = [16, 16, 16], strides = [1, 1, 1]} : vector<20x20x16xf32> to vector<16x16x16xf32>
    %6 = vector.extract_strided_slice %1 {offsets = [2, 2, 0], sizes = [16, 16, 16], strides = [1, 1, 1]} : vector<20x20x16xf32> to vector<16x16x16xf32>
    %7 = vector.extract_strided_slice %1 {offsets = [2, 4, 0], sizes = [16, 16, 16], strides = [1, 1, 1]} : vector<20x20x16xf32> to vector<16x16x16xf32>
    %8 = vector.extract_strided_slice %1 {offsets = [4, 0, 0], sizes = [16, 16, 16], strides = [1, 1, 1]} : vector<20x20x16xf32> to vector<16x16x16xf32>
    %9 = vector.extract_strided_slice %1 {offsets = [4, 2, 0], sizes = [16, 16, 16], strides = [1, 1, 1]} : vector<20x20x16xf32> to vector<16x16x16xf32>
    %10 = vector.extract_strided_slice %1 {offsets = [4, 4, 0], sizes = [16, 16, 16], strides = [1, 1, 1]} : vector<20x20x16xf32> to vector<16x16x16xf32>
    %11 = tpu.concatenate %2, %3, %4, %5, %6, %7, %8, %9, %10 in 2 : vector<16x16x16xf32>, vector<16x16x16xf32>, vector<16x16x16xf32>, vector<16x16x16xf32>, vector<16x16x16xf32>, vector<16x16x16xf32>, vector<16x16x16xf32>, vector<16x16x16xf32>, vector<16x16x16xf32> -> vector<16x16x144xf32>
    %12 = vector.shape_cast %11 : vector<16x16x144xf32> to vector<256x144xf32>
    %c0_3 = arith.constant 0 : index
    %c0_4 = arith.constant 0 : index
    %13 = vector.load %arg2[%c0_3, %c0_4] : memref<144x128xf32, #tpu.memory_space<vmem>>, vector<144x128xf32>
    %cst = arith.constant dense<0.000000e+00> : vector<256x128xf32>
    %14 = tpu.matmul %12, %13, %cst {dimension_numbers = #tpu.dot_dimension_numbers<[1], [0], [0], [1], [0, 0, 1, 1], [], []>} : vector<256x144xf32>, vector<144x128xf32>, vector<256x128xf32> -> vector<256x128xf32>
    %c0_5 = arith.constant 0 : index
    %c0_6 = arith.constant 0 : index
    %15 = vector.load %arg3[%c0_5, %c0_6] : memref<1x128xf32, #tpu.memory_space<vmem>>, vector<1x128xf32>
    %16 = vector.broadcast %15 : vector<1x128xf32> to vector<256x128xf32>
    %17 = arith.mulf %14, %16 : vector<256x128xf32>
    %c0_7 = arith.constant 0 : index
    %c0_8 = arith.constant 0 : index
    %18 = vector.load %arg4[%c0_7, %c0_8] : memref<1x128xf32, #tpu.memory_space<vmem>>, vector<1x128xf32>
    %19 = vector.broadcast %18 : vector<1x128xf32> to vector<256x128xf32>
    %20 = arith.addf %17, %19 : vector<256x128xf32>
    %c0_9 = arith.constant 0 : index
    %c0_10 = arith.constant 0 : index
    %c0_11 = arith.constant 0 : index
    %21 = vector.load %arg5[%c0_9, %c0_10, %c0_11] : memref<1x256x128xf32, #tpu.memory_space<vmem>>, vector<1x256x128xf32>
    %22 = vector.shape_cast %21 : vector<1x256x128xf32> to vector<256x128xf32>
    %23 = vector.shape_cast %20 : vector<256x128xf32> to vector<1x256x128xf32>
    tpu.vector_store %arg5[%c0_9, %c0_10, %c0_11], %23 {strides = array<i32>} : memref<1x256x128xf32, #tpu.memory_space<vmem>>, vector<1x256x128xf32>,
    return
  }
  func.func @transform_0(%arg0: i32) -> (i32, i32, i32, i32) {
    %c0_i32 = arith.constant 0 : i32
    %c0_i32_0 = arith.constant 0 : i32
    %c0_i32_1 = arith.constant 0 : i32
    %c0_i32_2 = arith.constant 0 : i32
    return %arg0, %c0_i32, %c0_i32_0, %c0_i32_1 : i32, i32, i32, i32
  }
  func.func @transform_1(%arg0: i32) -> (i32, i32) {
    %c0_i32 = arith.constant 0 : i32
    %c0_i32_0 = arith.constant 0 : i32
    %c0_i32_1 = arith.constant 0 : i32
    return %c0_i32, %c0_i32_0 : i32, i32
  }
  func.func @transform_2(%arg0: i32) -> (i32, i32) {
    %c0_i32 = arith.constant 0 : i32
    %c0_i32_0 = arith.constant 0 : i32
    %c0_i32_1 = arith.constant 0 : i32
    return %c0_i32, %c0_i32_0 : i32, i32
  }
  func.func @transform_3(%arg0: i32) -> (i32, i32) {
    %c0_i32 = arith.constant 0 : i32
    %c0_i32_0 = arith.constant 0 : i32
    %c0_i32_1 = arith.constant 0 : i32
    return %c0_i32, %c0_i32_0 : i32, i32
  }
  func.func @transform_4(%arg0: i32) -> (i32, i32, i32) {
    %c0_i32 = arith.constant 0 : i32
    %c0_i32_0 = arith.constant 0 : i32
    %c0_i32_1 = arith.constant 0 : i32
    return %arg0, %c0_i32, %c0_i32_0 : i32, i32, i32
  }
}

</mosaic_0001>

<llo_original>
// kernel: tpu_custom_call.1
$region0: #{tpu_custom_call.1}
  #allocation0 [shape = 'u32[]', space=smem, size = 0x4, offset = 0x4, fixed_abs, tag = 'smem constant byte address 0x4 - core index']
  #allocation1 [shape = 'u32[144,128]{1,0:T(1,128)}', space=vmem, size = 0x12000, scoped, tag = 'internal scratch']
  %s0 = inlined_call_operand.vmem [shape: f32[2,20,20,16], index: 0, kind: input, shape index: {}]
  %s1 = inlined_call_operand.vmem [shape: f32[144,128], index: 1, kind: input, shape index: {}]
  %s2 = inlined_call_operand.vmem [shape: f32[1,128], index: 2, kind: input, shape index: {}]
  %s3 = inlined_call_operand.vmem [shape: f32[1,128], index: 3, kind: input, shape index: {}]
  %s4 = inlined_call_operand.hbm [shape: f32[2,256,128], index: 4, kind: output, shape index: {}]
  %s5 = sld [smem:[#allocation0]]
  $region49: #{tpu_custom_call.1} parent=0
    _
  %s7 = ssub.s32 1, %s5
  %s8 = scalar_select 0, %s7, %s5
  $region1: #{tpu_custom_call.1} parent=0
    #allocation2 [shape = 'u8[262144]{0}', space=vmem, size = 0x40000, scoped, tag = 'output window, operand 0']
    #allocation3 [shape = 's32[2]{0}', space=sflag, size = 0x8, scoped, tag = 'scoped memory for tpu_custom_call.1']
    %9 = vsyncpa [#allocation3], 0
    %s10 = scalar_lea.sflag [#allocation3], 1
    %11 = vsyncpa %s10, 0
    loop: start=0, step=1, limit=4
    $region2: #{tpu_custom_call.1} parent=1 // loop_pre_header
      _
    $region3: #{tpu_custom_call.1} parent=1 // loop_header
      %s13 = sphi 0, %s17
      %p14 = scmp.ge.s32.totalorder %s13, 4
      %s23 = sphi 0, %s25
      %s26 = sphi 0, %s23
      %s27 = sphi 0, %s26
      %s43 = sphi 0, %s27
      %s47 = sphi 0, %s47
      %s49 = sphi 0, %s47
      %s50 = sphi 0, %s49
      %s64 = sphi 0, %s50
      %s68 = sphi 0, %s68
      %s70 = sphi 0, %s68
      %s71 = sphi 0, %s70
      %s85 = sphi 0, %s71
      %s89 = sphi 0, %s89
      %s91 = sphi 0, %s89
      %s92 = sphi 0, %s91
      %s106 = sphi 0, %s92
      %s112 = sphi 0, %s114
      %s115 = sphi 0, %s112
      %s116 = sphi 0, %s115
      %s132 = sphi 0, %s116
    $region4: #{tpu_custom_call.1} parent=1 // loop_header_branch
      %16 = sbr.rel (%p14) target = $region8
    $region5: #{tpu_custom_call.1} parent=1 // loop_body
      %s18 = ssub.s32 %s13, 1
      %s19 = ssub.s32 %s13, 2
      %s20 = sadd.s32 %s13, 1
      %s21 = ssub.s32 %s13, %s20
      %p22 = scmp.eq.s32.totalorder %s21, 0
      %s24 = sadd.s32 %s23, 1
      %s25 = scalar_select %p22, %s23, %s24
      %p28 = pneg %p22
      %p29 = scmp.eq.s32.totalorder %s13, 1
      %p30 = por %p28, %p29
      %p31 = scmp.ne.s32.totalorder %s23, %s26
      %p32 = scmp.eq.s32.totalorder %s13, 0
      %p33 = por %p31, %p32
      %p34 = scmp.ne.s32.totalorder %s23, %s26
      %p35 = scmp.eq.s32.totalorder %s18, 1
      %p36 = por %p34, %p35
      %p37 = scmp.ne.s32.totalorder %s26, %s27
      %p38 = scmp.eq.s32.totalorder %s18, 0
      %p39 = por %p37, %p38
      %p40 = scmp.ne.s32.totalorder %s26, %s27
      %p41 = scmp.eq.s32.totalorder %s19, 1
      %p42 = por %p40, %p41
      %p44 = scmp.ne.s32.totalorder %s27, %s43
      %p45 = scmp.eq.s32.totalorder %s19, 0
      %p46 = por %p44, %p45
      %s48 = sadd.s32 %s47, 1
      %p51 = scmp.eq.s32.totalorder %s13, 1
      %p52 = scmp.ne.s32.totalorder %s47, %s49
      %p53 = scmp.eq.s32.totalorder %s13, 0
      %p54 = por %p52, %p53
      %p55 = scmp.ne.s32.totalorder %s47, %s49
      %p56 = scmp.eq.s32.totalorder %s18, 1
      %p57 = por %p55, %p56
      %p58 = scmp.ne.s32.totalorder %s49, %s50
      %p59 = scmp.eq.s32.totalorder %s18, 0
      %p60 = por %p58, %p59
      %p61 = scmp.ne.s32.totalorder %s49, %s50
      %p62 = scmp.eq.s32.totalorder %s19, 1
      %p63 = por %p61, %p62
      %p65 = scmp.ne.s32.totalorder %s50, %s64
      %p66 = scmp.eq.s32.totalorder %s19, 0
      %p67 = por %p65, %p66
      %s69 = sadd.s32 %s68, 1
      %p72 = scmp.eq.s32.totalorder %s13, 1
      %p73 = scmp.ne.s32.totalorder %s68, %s70
      %p74 = scmp.eq.s32.totalorder %s13, 0
      %p75 = por %p73, %p74
      %p76 = scmp.ne.s32.totalorder %s68, %s70
      %p77 = scmp.eq.s32.totalorder %s18, 1
      %p78 = por %p76, %p77
      %p79 = scmp.ne.s32.totalorder %s70, %s71
      %p80 = scmp.eq.s32.totalorder %s18, 0
      %p81 = por %p79, %p80
      %p82 = scmp.ne.s32.totalorder %s70, %s71
      %p83 = scmp.eq.s32.totalorder %s19, 1
      %p84 = por %p82, %p83
      %p86 = scmp.ne.s32.totalorder %s71, %s85
      %p87 = scmp.eq.s32.totalorder %s19, 0
      %p88 = por %p86, %p87
      %s90 = sadd.s32 %s89, 1
      %p93 = scmp.eq.s32.totalorder %s13, 1
      %p94 = scmp.ne.s32.totalorder %s89, %s91
      %p95 = scmp.eq.s32.totalorder %s13, 0
      %p96 = por %p94, %p95
      %p97 = scmp.ne.s32.totalorder %s89, %s91
      %p98 = scmp.eq.s32.totalorder %s18, 1
      %p99 = por %p97, %p98
      %p100 = scmp.ne.s32.totalorder %s91, %s92
      %p101 = scmp.eq.s32.totalorder %s18, 0
      %p102 = por %p100, %p101
      %p103 = scmp.ne.s32.totalorder %s91, %s92
      %p104 = scmp.eq.s32.totalorder %s19, 1
      %p105 = por %p103, %p104
      %p107 = scmp.ne.s32.totalorder %s92, %s106
      %p108 = scmp.eq.s32.totalorder %s19, 0
      %p109 = por %p107, %p108
      %s110 = ssub.s32 %s13, %s20
      %p111 = scmp.eq.s32.totalorder %s110, 0
      %s113 = sadd.s32 %s112, 1
      %s114 = scalar_select %p111, %s112, %s113
      %p117 = pneg %p111
      %p118 = scmp.eq.s32.totalorder %s13, 1
      %p119 = por %p117, %p118
      %p120 = scmp.ne.s32.totalorder %s112, %s115
      %p121 = scmp.eq.s32.totalorder %s13, 0
      %p122 = por %p120, %p121
      %p123 = scmp.ne.s32.totalorder %s112, %s115
      %p124 = scmp.eq.s32.totalorder %s18, 1
      %p125 = por %p123, %p124
      %p126 = scmp.ne.s32.totalorder %s115, %s116
      %p127 = scmp.eq.s32.totalorder %s18, 0
      %p128 = por %p126, %p127
      %p129 = scmp.ne.s32.totalorder %s115, %s116
      %p130 = scmp.eq.s32.totalorder %s19, 1
      %p131 = por %p129, %p130
      %p133 = scmp.ne.s32.totalorder %s116, %s132
      %p134 = scmp.eq.s32.totalorder %s19, 0
      %p135 = por %p133, %p134
      %p136 = scmp.le.s32.totalorder 1, %s13
      %p137 = scmp.lt.s32.totalorder %s13, 3
      %p138 = pnand %p136, %p137
      %p139 = pneg %p138
      // Predicated region
      $region9: #{tpu_custom_call.1} parent=5 // pred_check
        _
      $region10: #{tpu_custom_call.1} parent=5 // pred_check_branch
        %141 = sbr.rel (%p138) target = $region12
      $region11: #{tpu_custom_call.1} parent=5 // pred_region
        %s142 = ssub.s32 %s13, 1
        // Predicated region
        $region13: #{tpu_custom_call.1} parent=11 // pred_check
          %p143 = pneg %p60
        $region14: #{tpu_custom_call.1} parent=11 // pred_check_branch
          %145 = sbr.rel (%p143) target = $region16
        $region15: #{tpu_custom_call.1} parent=11 // pred_region
          _
        $region16: #{tpu_custom_call.1} parent=11 // pred_fallthru
          _
        // Predicated region
        $region17: #{tpu_custom_call.1} parent=11 // pred_check
          %p146 = pneg %p81
        $region18: #{tpu_custom_call.1} parent=11 // pred_check_branch
          %148 = sbr.rel (%p146) target = $region20
        $region19: #{tpu_custom_call.1} parent=11 // pred_region
          _
        $region20: #{tpu_custom_call.1} parent=11 // pred_fallthru
          _
        // Predicated region
        $region21: #{tpu_custom_call.1} parent=11 // pred_check
          %p149 = pneg %p102
        $region22: #{tpu_custom_call.1} parent=11 // pred_check_branch
          %151 = sbr.rel (%p149) target = $region24
        $region23: #{tpu_custom_call.1} parent=11 // pred_region
          _
        $region24: #{tpu_custom_call.1} parent=11 // pred_fallthru
          _
      $region12: #{tpu_custom_call.1} parent=5 // pred_fallthru
        _
      %p152 = scmp.lt.s32.totalorder %s13, 2
      // Predicated region
      $region25: #{tpu_custom_call.1} parent=5 // pred_check
        %p153 = pneg %p152
      $region26: #{tpu_custom_call.1} parent=5 // pred_check_branch
        %155 = sbr.rel (%p153) target = $region28
      $region27: #{tpu_custom_call.1} parent=5 // pred_region
        // Predicated region
        $region29: #{tpu_custom_call.1} parent=27 // pred_check
          %p156 = pneg %p33
        $region30: #{tpu_custom_call.1} parent=27 // pred_check_branch
          %158 = sbr.rel (%p156) target = $region32
        $region31: #{tpu_custom_call.1} parent=27 // pred_region
          %p159 = scmp.lt.s32.totalorder %s13, 1
          %s160 = scalar_select %p159, %s13, 1
          %s161 = smul.addr %s160, 60
          %s162 = smul.addr %s161, 8
          %s163 = scalar_lea.vmem %s0, %s162
        $region32: #{tpu_custom_call.1} parent=27 // pred_fallthru
          _
      $region28: #{tpu_custom_call.1} parent=5 // pred_fallthru
        _
      %p164 = scmp.le.s32.totalorder 1, %s13
      %p165 = scmp.lt.s32.totalorder %s13, 3
      %p166 = pnand %p164, %p165
      %p167 = pneg %p166
      // Predicated region
      $region33: #{tpu_custom_call.1} parent=5 // pred_check
        _
      $region34: #{tpu_custom_call.1} parent=5 // pred_check_branch
        %169 = sbr.rel (%p166) target = $region36
      $region35: #{tpu_custom_call.1} parent=5 // pred_region
        %s170 = ssub.s32 %s13, 1
        %p171 = scmp.lt.s32.totalorder %s18, 1
        %s172 = scalar_select %p171, %s18, 1
        %s173 = smul.addr %s172, 60
        %s174 = smul.addr %s173, 8
        %s175 = scalar_lea.vmem %s0, %s174
        %p176 = pneg %p39
        %p177 = pneg %p36
        %p178 = pneg %p60
        %p179 = pneg %p57
        %p180 = pneg %p81
        %p181 = pneg %p78
        %p182 = pneg %p102
        %p183 = pneg %p99
        %p184 = pneg %p128
        %p185 = pneg %p125
        %s186 = sand.u32 %s115, 1
        %s187 = scalar_lea.sflag [#allocation3], %s186
        %s188 = sand.u32 %s115, 1
        %s189 = smul.addr %s188, 256
        %s190 = scalar_lea.vmem [#allocation2], %s189
        %p191 = scmp.lt.s32.totalorder %s18, 1
        %s192 = scalar_select %p191, %s18, 1
        %s193 = smul.addr %s192, 60
        %s194 = smul.addr %s193, 8
        %s195 = scalar_lea.vmem %s0, %s194
        %v196 = vld [vmem:[%s195] sm:$0xff]
        %v197 = vld [vmem:[%s195 + $0x8] sm:$0xff]
        %v198 = vld [vmem:[%s195 + $0x10] sm:$0xf]
        %v199 = vld [vmem:[%s195 + $0x18] sm:$0xff]
        %v200 = vld [vmem:[%s195 + $0x20] sm:$0xff]
        %v201 = vld [vmem:[%s195 + $0x28] sm:$0xf]
        %v202 = vld [vmem:[%s195 + $0x30] sm:$0xff]
        %v203 = vld [vmem:[%s195 + $0x38] sm:$0xff]
        %v204 = vld [vmem:[%s195 + $0x40] sm:$0xf]
        %v205 = vld [vmem:[%s195 + $0x48] sm:$0xff]
        %v206 = vld [vmem:[%s195 + $0x50] sm:$0xff]
        %v207 = vld [vmem:[%s195 + $0x58] sm:$0xf]
        %v208 = vld [vmem:[%s195 + $0x60] sm:$0xff]
        %v209 = vld [vmem:[%s195 + $0x68] sm:$0xff]
        %v210 = vld [vmem:[%s195 + $0x70] sm:$0xf]
        %v211 = vld [vmem:[%s195 + $0x78] sm:$0xff]
        %v212 = vld [vmem:[%s195 + $0x80] sm:$0xff]
        %v213 = vld [vmem:[%s195 + $0x88] sm:$0xf]
        %v214 = vld [vmem:[%s195 + $0x90] sm:$0xff]
        %v215 = vld [vmem:[%s195 + $0x98] sm:$0xff]
        %v216 = vld [vmem:[%s195 + $0xa0] sm:$0xf]
        %v217 = vld [vmem:[%s195 + $0xa8] sm:$0xff]
        %v218 = vld [vmem:[%s195 + $0xb0] sm:$0xff]
        %v219 = vld [vmem:[%s195 + $0xb8] sm:$0xf]
        %v220 = vld [vmem:[%s195 + $0xc0] sm:$0xff]
        %v221 = vld [vmem:[%s195 + $0xc8] sm:$0xff]
        %v222 = vld [vmem:[%s195 + $0xd0] sm:$0xf]
        %v223 = vld [vmem:[%s195 + $0xd8] sm:$0xff]
        %v224 = vld [vmem:[%s195 + $0xe0] sm:$0xff]
        %v225 = vld [vmem:[%s195 + $0xe8] sm:$0xf]
        %v226 = vld [vmem:[%s195 + $0xf0] sm:$0xff]
        %v227 = vld [vmem:[%s195 + $0xf8] sm:$0xff]
        %v228 = vld [vmem:[%s195 + $0x100] sm:$0xf]
        %v229 = vld [vmem:[%s195 + $0x108] sm:$0xff]
        %v230 = vld [vmem:[%s195 + $0x110] sm:$0xff]
        %v231 = vld [vmem:[%s195 + $0x118] sm:$0xf]
        %v232 = vld [vmem:[%s195 + $0x120] sm:$0xff]
        %v233 = vld [vmem:[%s195 + $0x128] sm:$0xff]
        %v234 = vld [vmem:[%s195 + $0x130] sm:$0xf]
        %v235 = vld [vmem:[%s195 + $0x138] sm:$0xff]
        %v236 = vld [vmem:[%s195 + $0x140] sm:$0xff]
        %v237 = vld [vmem:[%s195 + $0x148] sm:$0xf]
        %v238 = vld [vmem:[%s195 + $0x150] sm:$0xff]
        %v239 = vld [vmem:[%s195 + $0x158] sm:$0xff]
        %v240 = vld [vmem:[%s195 + $0x160] sm:$0xf]
        %v241 = vld [vmem:[%s195 + $0x168] sm:$0xff]
        %v242 = vld [vmem:[%s195 + $0x170] sm:$0xff]
        %v243 = vld [vmem:[%s195 + $0x178] sm:$0xf]
        %v244 = vld [vmem:[%s195 + $0x180] sm:$0xff]
        %v245 = vld [vmem:[%s195 + $0x188] sm:$0xff]
        %v246 = vld [vmem:[%s195 + $0x190] sm:$0xf]
        %v247 = vld [vmem:[%s195 + $0x198] sm:$0xff]
        %v248 = vld [vmem:[%s195 + $0x1a0] sm:$0xff]
        %v249 = vld [vmem:[%s195 + $0x1a8] sm:$0xf]
        %v250 = vld [vmem:[%s195 + $0x1b0] sm:$0xff]
        %v251 = vld [vmem:[%s195 + $0x1b8] sm:$0xff]
        %v252 = vld [vmem:[%s195 + $0x1c0] sm:$0xf]
        %v253 = vld [vmem:[%s195 + $0x1c8] sm:$0xff]
        %v254 = vld [vmem:[%s195 + $0x1d0] sm:$0xff]
        %v255 = vld [vmem:[%s195 + $0x1d8] sm:$0xf]
        %vm304 = vcmask 1045504
        %v305 = vrot.slane %v196, 2
        %v306 = vrot.slane %v197, 2
        %v307 = vsel %vm304, %v305, %v306
        %v308 = vrot.slane %v198, 2
        %v309 = vsel %vm304, %v306, %v308
        %v310 = vrot.slane %v199, 2
        %v311 = vrot.slane %v200, 2
        %v312 = vsel %vm304, %v310, %v311
        %v313 = vrot.slane %v201, 2
        %v314 = vsel %vm304, %v311, %v313
        %v315 = vrot.slane %v202, 2
        %v316 = vrot.slane %v203, 2
        %v317 = vsel %vm304, %v315, %v316
        %v318 = vrot.slane %v204, 2
        %v319 = vsel %vm304, %v316, %v318
        %v320 = vrot.slane %v205, 2
        %v321 = vrot.slane %v206, 2
        %v322 = vsel %vm304, %v320, %v321
        %v323 = vrot.slane %v207, 2
        %v324 = vsel %vm304, %v321, %v323
        %v325 = vrot.slane %v208, 2
        %v326 = vrot.slane %v209, 2
        %v327 = vsel %vm304, %v325, %v326
        %v328 = vrot.slane %v210, 2
        %v329 = vsel %vm304, %v326, %v328
        %v330 = vrot.slane %v211, 2
        %v331 = vrot.slane %v212, 2
        %v332 = vsel %vm304, %v330, %v331
        %v333 = vrot.slane %v213, 2
        %v334 = vsel %vm304, %v331, %v333
        %v335 = vrot.slane %v214, 2
        %v336 = vrot.slane %v215, 2
        %v337 = vsel %vm304, %v335, %v336
        %v338 = vrot.slane %v216, 2
        %v339 = vsel %vm304, %v336, %v338
        %v340 = vrot.slane %v217, 2
        %v341 = vrot.slane %v218, 2
        %v342 = vsel %vm304, %v340, %v341
        %v343 = vrot.slane %v219, 2
        %v344 = vsel %vm304, %v341, %v343
        %v345 = vrot.slane %v220, 2
        %v346 = vrot.slane %v221, 2
        %v347 = vsel %vm304, %v345, %v346
        %v348 = vrot.slane %v222, 2
        %v349 = vsel %vm304, %v346, %v348
        %v350 = vrot.slane %v223, 2
        %v351 = vrot.slane %v224, 2
        %v352 = vsel %vm304, %v350, %v351
        %v353 = vrot.slane %v225, 2
        %v354 = vsel %vm304, %v351, %v353
        %v355 = vrot.slane %v226, 2
        %v356 = vrot.slane %v227, 2
        %v357 = vsel %vm304, %v355, %v356
        %v358 = vrot.slane %v228, 2
        %v359 = vsel %vm304, %v356, %v358
        %v360 = vrot.slane %v229, 2
        %v361 = vrot.slane %v230, 2
        %v362 = vsel %vm304, %v360, %v361
        %v363 = vrot.slane %v231, 2
        %v364 = vsel %vm304, %v361, %v363
        %v365 = vrot.slane %v232, 2
        %v366 = vrot.slane %v233, 2
        %v367 = vsel %vm304, %v365, %v366
        %v368 = vrot.slane %v234, 2
        %v369 = vsel %vm304, %v366, %v368
        %v370 = vrot.slane %v235, 2
        %v371 = vrot.slane %v236, 2
        %v372 = vsel %vm304, %v370, %v371
        %v373 = vrot.slane %v237, 2
        %v374 = vsel %vm304, %v371, %v373
        %v375 = vrot.slane %v238, 2
        %v376 = vrot.slane %v239, 2
        %v377 = vsel %vm304, %v375, %v376
        %v378 = vrot.slane %v240, 2
        %v379 = vsel %vm304, %v376, %v378
        %v380 = vrot.slane %v241, 2
        %v381 = vrot.slane %v242, 2
        %v382 = vsel %vm304, %v380, %v381
        %v383 = vrot.slane %v243, 2
        %v384 = vsel %vm304, %v381, %v383
        %385 = vrot.lane.b32.xlu0 %v307, 16
        %v386 = vpop.permute.xlu0 %385
        %387 = vrot.lane.b32.xlu0 %v309, 16
        %v388 = vpop.permute.xlu0 %387
        %389 = vrot.lane.b32.xlu0 %v312, 16
        %v390 = vpop.permute.xlu0 %389
        %391 = vrot.lane.b32.xlu0 %v314, 16
        %v392 = vpop.permute.xlu0 %391
        %393 = vrot.lane.b32.xlu0 %v317, 16
        %v394 = vpop.permute.xlu0 %393
        %395 = vrot.lane.b32.xlu0 %v319, 16
        %v396 = vpop.permute.xlu0 %395
        %397 = vrot.lane.b32.xlu0 %v322, 16
        %v398 = vpop.permute.xlu0 %397
        %399 = vrot.lane.b32.xlu0 %v324, 16
        %v400 = vpop.permute.xlu0 %399
        %401 = vrot.lane.b32.xlu0 %v327, 16
        %v402 = vpop.permute.xlu0 %401
        %403 = vrot.lane.b32.xlu0 %v329, 16
        %v404 = vpop.permute.xlu0 %403
        %405 = vrot.lane.b32.xlu0 %v332, 16
        %v406 = vpop.permute.xlu0 %405
        %407 = vrot.lane.b32.xlu0 %v334, 16
        %v408 = vpop.permute.xlu0 %407
        %409 = vrot.lane.b32.xlu0 %v337, 16
        %v410 = vpop.permute.xlu0 %409
        %411 = vrot.lane.b32.xlu0 %v339, 16
        %v412 = vpop.permute.xlu0 %411
        %413 = vrot.lane.b32.xlu0 %v342, 16
        %v414 = vpop.permute.xlu0 %413
        %415 = vrot.lane.b32.xlu0 %v344, 16
        %v416 = vpop.permute.xlu0 %415
        %417 = vrot.lane.b32.xlu0 %v347, 16
        %v418 = vpop.permute.xlu0 %417
        %419 = vrot.lane.b32.xlu0 %v349, 16
        %v420 = vpop.permute.xlu0 %419
        %421 = vrot.lane.b32.xlu0 %v352, 16
        %v422 = vpop.permute.xlu0 %421
        %423 = vrot.lane.b32.xlu0 %v354, 16
        %v424 = vpop.permute.xlu0 %423
        %425 = vrot.lane.b32.xlu0 %v357, 16
        %v426 = vpop.permute.xlu0 %425
        %427 = vrot.lane.b32.xlu0 %v359, 16
        %v428 = vpop.permute.xlu0 %427
        %429 = vrot.lane.b32.xlu0 %v362, 16
        %v430 = vpop.permute.xlu0 %429
        %431 = vrot.lane.b32.xlu0 %v364, 16
        %v432 = vpop.permute.xlu0 %431
        %433 = vrot.lane.b32.xlu0 %v367, 16
        %v434 = vpop.permute.xlu0 %433
        %435 = vrot.lane.b32.xlu0 %v369, 16
        %v436 = vpop.permute.xlu0 %435
        %437 = vrot.lane.b32.xlu0 %v372, 16
        %v438 = vpop.permute.xlu0 %437
        %439 = vrot.lane.b32.xlu0 %v374, 16
        %v440 = vpop.permute.xlu0 %439
        %441 = vrot.lane.b32.xlu0 %v377, 16
        %v442 = vpop.permute.xlu0 %441
        %443 = vrot.lane.b32.xlu0 %v379, 16
        %v444 = vpop.permute.xlu0 %443
        %445 = vrot.lane.b32.xlu0 %v382, 16
        %v446 = vpop.permute.xlu0 %445
        %447 = vrot.lane.b32.xlu0 %v384, 16
        %v448 = vpop.permute.xlu0 %447
        %vm481 = vcmask 1043456
        %v482 = vrot.slane %v196, 4
        %v483 = vrot.slane %v197, 4
        %v484 = vsel %vm481, %v482, %v483
        %v485 = vrot.slane %v198, 4
        %v486 = vsel %vm481, %v483, %v485
        %v487 = vrot.slane %v199, 4
        %v488 = vrot.slane %v200, 4
        %v489 = vsel %vm481, %v487, %v488
        %v490 = vrot.slane %v201, 4
        %v491 = vsel %vm481, %v488, %v490
        %v492 = vrot.slane %v202, 4
        %v493 = vrot.slane %v203, 4
        %v494 = vsel %vm481, %v492, %v493
        %v495 = vrot.slane %v204, 4
        %v496 = vsel %vm481, %v493, %v495
        %v497 = vrot.slane %v205, 4
        %v498 = vrot.slane %v206, 4
        %v499 = vsel %vm481, %v497, %v498
        %v500 = vrot.slane %v207, 4
        %v501 = vsel %vm481, %v498, %v500
        %v502 = vrot.slane %v208, 4
        %v503 = vrot.slane %v209, 4
        %v504 = vsel %vm481, %v502, %v503
        %v505 = vrot.slane %v210, 4
        %v506 = vsel %vm481, %v503, %v505
        %v507 = vrot.slane %v211, 4
        %v508 = vrot.slane %v212, 4
        %v509 = vsel %vm481, %v507, %v508
        %v510 = vrot.slane %v213, 4
        %v511 = vsel %vm481, %v508, %v510
        %v512 = vrot.slane %v214, 4
        %v513 = vrot.slane %v215, 4
        %v514 = vsel %vm481, %v512, %v513
        %v515 = vrot.slane %v216, 4
        %v516 = vsel %vm481, %v513, %v515
        %v517 = vrot.slane %v217, 4
        %v518 = vrot.slane %v218, 4
        %v519 = vsel %vm481, %v517, %v518
        %v520 = vrot.slane %v219, 4
        %v521 = vsel %vm481, %v518, %v520
        %v522 = vrot.slane %v220, 4
        %v523 = vrot.slane %v221, 4
        %v524 = vsel %vm481, %v522, %v523
        %v525 = vrot.slane %v222, 4
        %v526 = vsel %vm481, %v523, %v525
        %v527 = vrot.slane %v223, 4
        %v528 = vrot.slane %v224, 4
        %v529 = vsel %vm481, %v527, %v528
        %v530 = vrot.slane %v225, 4
        %v531 = vsel %vm481, %v528, %v530
        %v532 = vrot.slane %v226, 4
        %v533 = vrot.slane %v227, 4
        %v534 = vsel %vm481, %v532, %v533
        %v535 = vrot.slane %v228, 4
        %v536 = vsel %vm481, %v533, %v535
        %v537 = vrot.slane %v229, 4
        %v538 = vrot.slane %v230, 4
        %v539 = vsel %vm481, %v537, %v538
        %v540 = vrot.slane %v231, 4
        %v541 = vsel %vm481, %v538, %v540
        %v542 = vrot.slane %v232, 4
        %v543 = vrot.slane %v233, 4
        %v544 = vsel %vm481, %v542, %v543
        %v545 = vrot.slane %v234, 4
        %v546 = vsel %vm481, %v543, %v545
        %v547 = vrot.slane %v235, 4
        %v548 = vrot.slane %v236, 4
        %v549 = vsel %vm481, %v547, %v548
        %v550 = vrot.slane %v237, 4
        %v551 = vsel %vm481, %v548, %v550
        %v552 = vrot.slane %v238, 4
        %v553 = vrot.slane %v239, 4
        %v554 = vsel %vm481, %v552, %v553
        %v555 = vrot.slane %v240, 4
        %v556 = vsel %vm481, %v553, %v555
        %v557 = vrot.slane %v241, 4
        %v558 = vrot.slane %v242, 4
        %v559 = vsel %vm481, %v557, %v558
        %v560 = vrot.slane %v243, 4
        %v561 = vsel %vm481, %v558, %v560
        %562 = vrot.lane.b32.xlu0 %v484, 32
        %v563 = vpop.permute.xlu0 %562
        %564 = vrot.lane.b32.xlu0 %v486, 32
        %v565 = vpop.permute.xlu0 %564
        %566 = vrot.lane.b32.xlu0 %v489, 32
        %v567 = vpop.permute.xlu0 %566
        %568 = vrot.lane.b32.xlu0 %v491, 32
        %v569 = vpop.permute.xlu0 %568
        %570 = vrot.lane.b32.xlu0 %v494, 32
        %v571 = vpop.permute.xlu0 %570
        %572 = vrot.lane.b32.xlu0 %v496, 32
        %v573 = vpop.permute.xlu0 %572
        %574 = vrot.lane.b32.xlu0 %v499, 32
        %v575 = vpop.permute.xlu0 %574
        %576 = vrot.lane.b32.xlu0 %v501, 32
        %v577 = vpop.permute.xlu0 %576
        %578 = vrot.lane.b32.xlu0 %v504, 32
        %v579 = vpop.permute.xlu0 %578
        %580 = vrot.lane.b32.xlu0 %v506, 32
        %v581 = vpop.permute.xlu0 %580
        %582 = vrot.lane.b32.xlu0 %v509, 32
        %v583 = vpop.permute.xlu0 %582
        %584 = vrot.lane.b32.xlu0 %v511, 32
        %v585 = vpop.permute.xlu0 %584
        %586 = vrot.lane.b32.xlu0 %v514, 32
        %v587 = vpop.permute.xlu0 %586
        %588 = vrot.lane.b32.xlu0 %v516, 32
        %v589 = vpop.permute.xlu0 %588
        %590 = vrot.lane.b32.xlu0 %v519, 32
        %v591 = vpop.permute.xlu0 %590
        %592 = vrot.lane.b32.xlu0 %v521, 32
        %v593 = vpop.permute.xlu0 %592
        %594 = vrot.lane.b32.xlu0 %v524, 32
        %v595 = vpop.permute.xlu0 %594
        %596 = vrot.lane.b32.xlu0 %v526, 32
        %v597 = vpop.permute.xlu0 %596
        %598 = vrot.lane.b32.xlu0 %v529, 32
        %v599 = vpop.permute.xlu0 %598
        %600 = vrot.lane.b32.xlu0 %v531, 32
        %v601 = vpop.permute.xlu0 %600
        %602 = vrot.lane.b32.xlu0 %v534, 32
        %v603 = vpop.permute.xlu0 %602
        %604 = vrot.lane.b32.xlu0 %v536, 32
        %v605 = vpop.permute.xlu0 %604
        %606 = vrot.lane.b32.xlu0 %v539, 32
        %v607 = vpop.permute.xlu0 %606
        %608 = vrot.lane.b32.xlu0 %v541, 32
        %v609 = vpop.permute.xlu0 %608
        %610 = vrot.lane.b32.xlu0 %v544, 32
        %v611 = vpop.permute.xlu0 %610
        %612 = vrot.lane.b32.xlu0 %v546, 32
        %v613 = vpop.permute.xlu0 %612
        %614 = vrot.lane.b32.xlu0 %v549, 32
        %v615 = vpop.permute.xlu0 %614
        %616 = vrot.lane.b32.xlu0 %v551, 32
        %v617 = vpop.permute.xlu0 %616
        %618 = vrot.lane.b32.xlu0 %v554, 32
        %v619 = vpop.permute.xlu0 %618
        %620 = vrot.lane.b32.xlu0 %v556, 32
        %v621 = vpop.permute.xlu0 %620
        %622 = vrot.lane.b32.xlu0 %v559, 32
        %v623 = vpop.permute.xlu0 %622
        %624 = vrot.lane.b32.xlu0 %v561, 32
        %v625 = vpop.permute.xlu0 %624
        %662 = vrot.lane.b32.xlu0 %v202, 48
        %v663 = vpop.permute.xlu0 %662
        %664 = vrot.lane.b32.xlu0 %v203, 48
        %v665 = vpop.permute.xlu0 %664
        %666 = vrot.lane.b32.xlu0 %v205, 48
        %v667 = vpop.permute.xlu0 %666
        %668 = vrot.lane.b32.xlu0 %v206, 48
        %v669 = vpop.permute.xlu0 %668
        %670 = vrot.lane.b32.xlu0 %v208, 48
        %v671 = vpop.permute.xlu0 %670
        %672 = vrot.lane.b32.xlu0 %v209, 48
        %v673 = vpop.permute.xlu0 %672
        %674 = vrot.lane.b32.xlu0 %v211, 48
        %v675 = vpop.permute.xlu0 %674
        %676 = vrot.lane.b32.xlu0 %v212, 48
        %v677 = vpop.permute.xlu0 %676
        %678 = vrot.lane.b32.xlu0 %v214, 48
        %v679 = vpop.permute.xlu0 %678
        %680 = vrot.lane.b32.xlu0 %v215, 48
        %v681 = vpop.permute.xlu0 %680
        %682 = vrot.lane.b32.xlu0 %v217, 48
        %v683 = vpop.permute.xlu0 %682
        %684 = vrot.lane.b32.xlu0 %v218, 48
        %v685 = vpop.permute.xlu0 %684
        %686 = vrot.lane.b32.xlu0 %v220, 48
        %v687 = vpop.permute.xlu0 %686
        %688 = vrot.lane.b32.xlu0 %v221, 48
        %v689 = vpop.permute.xlu0 %688
        %690 = vrot.lane.b32.xlu0 %v223, 48
        %v691 = vpop.permute.xlu0 %690
        %692 = vrot.lane.b32.xlu0 %v224, 48
        %v693 = vpop.permute.xlu0 %692
        %694 = vrot.lane.b32.xlu0 %v226, 48
        %v695 = vpop.permute.xlu0 %694
        %696 = vrot.lane.b32.xlu0 %v227, 48
        %v697 = vpop.permute.xlu0 %696
        %698 = vrot.lane.b32.xlu0 %v229, 48
        %v699 = vpop.permute.xlu0 %698
        %700 = vrot.lane.b32.xlu0 %v230, 48
        %v701 = vpop.permute.xlu0 %700
        %702 = vrot.lane.b32.xlu0 %v232, 48
        %v703 = vpop.permute.xlu0 %702
        %704 = vrot.lane.b32.xlu0 %v233, 48
        %v705 = vpop.permute.xlu0 %704
        %706 = vrot.lane.b32.xlu0 %v235, 48
        %v707 = vpop.permute.xlu0 %706
        %708 = vrot.lane.b32.xlu0 %v236, 48
        %v709 = vpop.permute.xlu0 %708
        %710 = vrot.lane.b32.xlu0 %v238, 48
        %v711 = vpop.permute.xlu0 %710
        %712 = vrot.lane.b32.xlu0 %v239, 48
        %v713 = vpop.permute.xlu0 %712
        %714 = vrot.lane.b32.xlu0 %v241, 48
        %v715 = vpop.permute.xlu0 %714
        %716 = vrot.lane.b32.xlu0 %v242, 48
        %v717 = vpop.permute.xlu0 %716
        %718 = vrot.lane.b32.xlu0 %v244, 48
        %v719 = vpop.permute.xlu0 %718
        %720 = vrot.lane.b32.xlu0 %v245, 48
        %v721 = vpop.permute.xlu0 %720
        %722 = vrot.lane.b32.xlu0 %v247, 48
        %v723 = vpop.permute.xlu0 %722
        %724 = vrot.lane.b32.xlu0 %v248, 48
        %v725 = vpop.permute.xlu0 %724
        %v760 = vrot.slane %v244, 2
        %v761 = vrot.slane %v245, 2
        %v762 = vsel %vm304, %v760, %v761
        %v763 = vrot.slane %v246, 2
        %v764 = vsel %vm304, %v761, %v763
        %v765 = vrot.slane %v247, 2
        %v766 = vrot.slane %v248, 2
        %v767 = vsel %vm304, %v765, %v766
        %v768 = vrot.slane %v249, 2
        %v769 = vsel %vm304, %v766, %v768
        %770 = vrot.lane.b32.xlu0 %v317, 64
        %v771 = vpop.permute.xlu0 %770
        %772 = vrot.lane.b32.xlu0 %v319, 64
        %v773 = vpop.permute.xlu0 %772
        %774 = vrot.lane.b32.xlu0 %v322, 64
        %v775 = vpop.permute.xlu0 %774
        %776 = vrot.lane.b32.xlu0 %v324, 64
        %v777 = vpop.permute.xlu0 %776
        %778 = vrot.lane.b32.xlu0 %v327, 64
        %v779 = vpop.permute.xlu0 %778
        %780 = vrot.lane.b32.xlu0 %v329, 64
        %v781 = vpop.permute.xlu0 %780
        %782 = vrot.lane.b32.xlu0 %v332, 64
        %v783 = vpop.permute.xlu0 %782
        %784 = vrot.lane.b32.xlu0 %v334, 64
        %v785 = vpop.permute.xlu0 %784
        %786 = vrot.lane.b32.xlu0 %v337, 64
        %v787 = vpop.permute.xlu0 %786
        %788 = vrot.lane.b32.xlu0 %v339, 64
        %v789 = vpop.permute.xlu0 %788
        %790 = vrot.lane.b32.xlu0 %v342, 64
        %v791 = vpop.permute.xlu0 %790
        %792 = vrot.lane.b32.xlu0 %v344, 64
        %v793 = vpop.permute.xlu0 %792
        %794 = vrot.lane.b32.xlu0 %v347, 64
        %v795 = vpop.permute.xlu0 %794
        %796 = vrot.lane.b32.xlu0 %v349, 64
        %v797 = vpop.permute.xlu0 %796
        %798 = vrot.lane.b32.xlu0 %v352, 64
        %v799 = vpop.permute.xlu0 %798
        %800 = vrot.lane.b32.xlu0 %v354, 64
        %v801 = vpop.permute.xlu0 %800
        %802 = vrot.lane.b32.xlu0 %v357, 64
        %v803 = vpop.permute.xlu0 %802
        %804 = vrot.lane.b32.xlu0 %v359, 64
        %v805 = vpop.permute.xlu0 %804
        %806 = vrot.lane.b32.xlu0 %v362, 64
        %v807 = vpop.permute.xlu0 %806
        %808 = vrot.lane.b32.xlu0 %v364, 64
        %v809 = vpop.permute.xlu0 %808
        %810 = vrot.lane.b32.xlu0 %v367, 64
        %v811 = vpop.permute.xlu0 %810
        %812 = vrot.lane.b32.xlu0 %v369, 64
        %v813 = vpop.permute.xlu0 %812
        %814 = vrot.lane.b32.xlu0 %v372, 64
        %v815 = vpop.permute.xlu0 %814
        %816 = vrot.lane.b32.xlu0 %v374, 64
        %v817 = vpop.permute.xlu0 %816
        %818 = vrot.lane.b32.xlu0 %v377, 64
        %v819 = vpop.permute.xlu0 %818
        %820 = vrot.lane.b32.xlu0 %v379, 64
        %v821 = vpop.permute.xlu0 %820
        %822 = vrot.lane.b32.xlu0 %v382, 64
        %v823 = vpop.permute.xlu0 %822
        %824 = vrot.lane.b32.xlu0 %v384, 64
        %v825 = vpop.permute.xlu0 %824
        %826 = vrot.lane.b32.xlu0 %v762, 64
        %v827 = vpop.permute.xlu0 %826
        %828 = vrot.lane.b32.xlu0 %v764, 64
        %v829 = vpop.permute.xlu0 %828
        %830 = vrot.lane.b32.xlu0 %v767, 64
        %v831 = vpop.permute.xlu0 %830
        %832 = vrot.lane.b32.xlu0 %v769, 64
        %v833 = vpop.permute.xlu0 %832
        %v866 = vrot.slane %v244, 4
        %v867 = vrot.slane %v245, 4
        %v868 = vsel %vm481, %v866, %v867
        %v869 = vrot.slane %v246, 4
        %v870 = vsel %vm481, %v867, %v869
        %v871 = vrot.slane %v247, 4
        %v872 = vrot.slane %v248, 4
        %v873 = vsel %vm481, %v871, %v872
        %v874 = vrot.slane %v249, 4
        %v875 = vsel %vm481, %v872, %v874
        %876 = vrot.lane.b32.xlu0 %v494, 80
        %v877 = vpop.permute.xlu0 %876
        %878 = vrot.lane.b32.xlu0 %v496, 80
        %v879 = vpop.permute.xlu0 %878
        %880 = vrot.lane.b32.xlu0 %v499, 80
        %v881 = vpop.permute.xlu0 %880
        %882 = vrot.lane.b32.xlu0 %v501, 80
        %v883 = vpop.permute.xlu0 %882
        %884 = vrot.lane.b32.xlu0 %v504, 80
        %v885 = vpop.permute.xlu0 %884
        %886 = vrot.lane.b32.xlu0 %v506, 80
        %v887 = vpop.permute.xlu0 %886
        %888 = vrot.lane.b32.xlu0 %v509, 80
        %v889 = vpop.permute.xlu0 %888
        %890 = vrot.lane.b32.xlu0 %v511, 80
        %v891 = vpop.permute.xlu0 %890
        %892 = vrot.lane.b32.xlu0 %v514, 80
        %v893 = vpop.permute.xlu0 %892
        %894 = vrot.lane.b32.xlu0 %v516, 80
        %v895 = vpop.permute.xlu0 %894
        %896 = vrot.lane.b32.xlu0 %v519, 80
        %v897 = vpop.permute.xlu0 %896
        %898 = vrot.lane.b32.xlu0 %v521, 80
        %v899 = vpop.permute.xlu0 %898
        %900 = vrot.lane.b32.xlu0 %v524, 80
        %v901 = vpop.permute.xlu0 %900
        %902 = vrot.lane.b32.xlu0 %v526, 80
        %v903 = vpop.permute.xlu0 %902
        %904 = vrot.lane.b32.xlu0 %v529, 80
        %v905 = vpop.permute.xlu0 %904
        %906 = vrot.lane.b32.xlu0 %v531, 80
        %v907 = vpop.permute.xlu0 %906
        %908 = vrot.lane.b32.xlu0 %v534, 80
        %v909 = vpop.permute.xlu0 %908
        %910 = vrot.lane.b32.xlu0 %v536, 80
        %v911 = vpop.permute.xlu0 %910
        %912 = vrot.lane.b32.xlu0 %v539, 80
        %v913 = vpop.permute.xlu0 %912
        %914 = vrot.lane.b32.xlu0 %v541, 80
        %v915 = vpop.permute.xlu0 %914
        %916 = vrot.lane.b32.xlu0 %v544, 80
        %v917 = vpop.permute.xlu0 %916
        %918 = vrot.lane.b32.xlu0 %v546, 80
        %v919 = vpop.permute.xlu0 %918
        %920 = vrot.lane.b32.xlu0 %v549, 80
        %v921 = vpop.permute.xlu0 %920
        %922 = vrot.lane.b32.xlu0 %v551, 80
        %v923 = vpop.permute.xlu0 %922
        %924 = vrot.lane.b32.xlu0 %v554, 80
        %v925 = vpop.permute.xlu0 %924
        %926 = vrot.lane.b32.xlu0 %v556, 80
        %v927 = vpop.permute.xlu0 %926
        %928 = vrot.lane.b32.xlu0 %v559, 80
        %v929 = vpop.permute.xlu0 %928
        %930 = vrot.lane.b32.xlu0 %v561, 80
        %v931 = vpop.permute.xlu0 %930
        %932 = vrot.lane.b32.xlu0 %v868, 80
        %v933 = vpop.permute.xlu0 %932
        %934 = vrot.lane.b32.xlu0 %v870, 80
        %v935 = vpop.permute.xlu0 %934
        %936 = vrot.lane.b32.xlu0 %v873, 80
        %v937 = vpop.permute.xlu0 %936
        %938 = vrot.lane.b32.xlu0 %v875, 80
        %v939 = vpop.permute.xlu0 %938
        %976 = vrot.lane.b32.xlu0 %v208, 96
        %v977 = vpop.permute.xlu0 %976
        %978 = vrot.lane.b32.xlu0 %v209, 96
        %v979 = vpop.permute.xlu0 %978
        %980 = vrot.lane.b32.xlu0 %v211, 96
        %v981 = vpop.permute.xlu0 %980
        %982 = vrot.lane.b32.xlu0 %v212, 96
        %v983 = vpop.permute.xlu0 %982
        %984 = vrot.lane.b32.xlu0 %v214, 96
        %v985 = vpop.permute.xlu0 %984
        %986 = vrot.lane.b32.xlu0 %v215, 96
        %v987 = vpop.permute.xlu0 %986
        %988 = vrot.lane.b32.xlu0 %v217, 96
        %v989 = vpop.permute.xlu0 %988
        %990 = vrot.lane.b32.xlu0 %v218, 96
        %v991 = vpop.permute.xlu0 %990
        %992 = vrot.lane.b32.xlu0 %v220, 96
        %v993 = vpop.permute.xlu0 %992
        %994 = vrot.lane.b32.xlu0 %v221, 96
        %v995 = vpop.permute.xlu0 %994
        %996 = vrot.lane.b32.xlu0 %v223, 96
        %v997 = vpop.permute.xlu0 %996
        %998 = vrot.lane.b32.xlu0 %v224, 96
        %v999 = vpop.permute.xlu0 %998
        %1000 = vrot.lane.b32.xlu0 %v226, 96
        %v1001 = vpop.permute.xlu0 %1000
        %1002 = vrot.lane.b32.xlu0 %v227, 96
        %v1003 = vpop.permute.xlu0 %1002
        %1004 = vrot.lane.b32.xlu0 %v229, 96
        %v1005 = vpop.permute.xlu0 %1004
        %1006 = vrot.lane.b32.xlu0 %v230, 96
        %v1007 = vpop.permute.xlu0 %1006
        %1008 = vrot.lane.b32.xlu0 %v232, 96
        %v1009 = vpop.permute.xlu0 %1008
        %1010 = vrot.lane.b32.xlu0 %v233, 96
        %v1011 = vpop.permute.xlu0 %1010
        %1012 = vrot.lane.b32.xlu0 %v235, 96
        %v1013 = vpop.permute.xlu0 %1012
        %1014 = vrot.lane.b32.xlu0 %v236, 96
        %v1015 = vpop.permute.xlu0 %1014
        %1016 = vrot.lane.b32.xlu0 %v238, 96
        %v1017 = vpop.permute.xlu0 %1016
        %1018 = vrot.lane.b32.xlu0 %v239, 96
        %v1019 = vpop.permute.xlu0 %1018
        %1020 = vrot.lane.b32.xlu0 %v241, 96
        %v1021 = vpop.permute.xlu0 %1020
        %1022 = vrot.lane.b32.xlu0 %v242, 96
        %v1023 = vpop.permute.xlu0 %1022
        %1024 = vrot.lane.b32.xlu0 %v244, 96
        %v1025 = vpop.permute.xlu0 %1024
        %1026 = vrot.lane.b32.xlu0 %v245, 96
        %v1027 = vpop.permute.xlu0 %1026
        %1028 = vrot.lane.b32.xlu0 %v247, 96
        %v1029 = vpop.permute.xlu0 %1028
        %1030 = vrot.lane.b32.xlu0 %v248, 96
        %v1031 = vpop.permute.xlu0 %1030
        %1032 = vrot.lane.b32.xlu0 %v250, 96
        %v1033 = vpop.permute.xlu0 %1032
        %1034 = vrot.lane.b32.xlu0 %v251, 96
        %v1035 = vpop.permute.xlu0 %1034
        %1036 = vrot.lane.b32.xlu0 %v253, 96
        %v1037 = vpop.permute.xlu0 %1036
        %1038 = vrot.lane.b32.xlu0 %v254, 96
        %v1039 = vpop.permute.xlu0 %1038
        %v1074 = vrot.slane %v250, 2
        %v1075 = vrot.slane %v251, 2
        %v1076 = vsel %vm304, %v1074, %v1075
        %v1077 = vrot.slane %v252, 2
        %v1078 = vsel %vm304, %v1075, %v1077
        %v1079 = vrot.slane %v253, 2
        %v1080 = vrot.slane %v254, 2
        %v1081 = vsel %vm304, %v1079, %v1080
        %v1082 = vrot.slane %v255, 2
        %v1083 = vsel %vm304, %v1080, %v1082
        %1084 = vrot.lane.b32.xlu0 %v327, 112
        %v1085 = vpop.permute.xlu0 %1084
        %1086 = vrot.lane.b32.xlu0 %v329, 112
        %v1087 = vpop.permute.xlu0 %1086
        %1088 = vrot.lane.b32.xlu0 %v332, 112
        %v1089 = vpop.permute.xlu0 %1088
        %1090 = vrot.lane.b32.xlu0 %v334, 112
        %v1091 = vpop.permute.xlu0 %1090
        %1092 = vrot.lane.b32.xlu0 %v337, 112
        %v1093 = vpop.permute.xlu0 %1092
        %1094 = vrot.lane.b32.xlu0 %v339, 112
        %v1095 = vpop.permute.xlu0 %1094
        %1096 = vrot.lane.b32.xlu0 %v342, 112
        %v1097 = vpop.permute.xlu0 %1096
        %1098 = vrot.lane.b32.xlu0 %v344, 112
        %v1099 = vpop.permute.xlu0 %1098
        %1100 = vrot.lane.b32.xlu0 %v347, 112
        %v1101 = vpop.permute.xlu0 %1100
        %1102 = vrot.lane.b32.xlu0 %v349, 112
        %v1103 = vpop.permute.xlu0 %1102
        %1104 = vrot.lane.b32.xlu0 %v352, 112
        %v1105 = vpop.permute.xlu0 %1104
        %1106 = vrot.lane.b32.xlu0 %v354, 112
        %v1107 = vpop.permute.xlu0 %1106
        %1108 = vrot.lane.b32.xlu0 %v357, 112
        %v1109 = vpop.permute.xlu0 %1108
        %1110 = vrot.lane.b32.xlu0 %v359, 112
        %v1111 = vpop.permute.xlu0 %1110
        %1112 = vrot.lane.b32.xlu0 %v362, 112
        %v1113 = vpop.permute.xlu0 %1112
        %1114 = vrot.lane.b32.xlu0 %v364, 112
        %v1115 = vpop.permute.xlu0 %1114
        %1116 = vrot.lane.b32.xlu0 %v367, 112
        %v1117 = vpop.permute.xlu0 %1116
        %1118 = vrot.lane.b32.xlu0 %v369, 112
        %v1119 = vpop.permute.xlu0 %1118
        %1120 = vrot.lane.b32.xlu0 %v372, 112
        %v1121 = vpop.permute.xlu0 %1120
        %1122 = vrot.lane.b32.xlu0 %v374, 112
        %v1123 = vpop.permute.xlu0 %1122
        %1124 = vrot.lane.b32.xlu0 %v377, 112
        %v1125 = vpop.permute.xlu0 %1124
        %1126 = vrot.lane.b32.xlu0 %v379, 112
        %v1127 = vpop.permute.xlu0 %1126
        %1128 = vrot.lane.b32.xlu0 %v382, 112
        %v1129 = vpop.permute.xlu0 %1128
        %1130 = vrot.lane.b32.xlu0 %v384, 112
        %v1131 = vpop.permute.xlu0 %1130
        %1132 = vrot.lane.b32.xlu0 %v762, 112
        %v1133 = vpop.permute.xlu0 %1132
        %1134 = vrot.lane.b32.xlu0 %v764, 112
        %v1135 = vpop.permute.xlu0 %1134
        %1136 = vrot.lane.b32.xlu0 %v767, 112
        %v1137 = vpop.permute.xlu0 %1136
        %1138 = vrot.lane.b32.xlu0 %v769, 112
        %v1139 = vpop.permute.xlu0 %1138
        %1140 = vrot.lane.b32.xlu0 %v1076, 112
        %v1141 = vpop.permute.xlu0 %1140
        %1142 = vrot.lane.b32.xlu0 %v1078, 112
        %v1143 = vpop.permute.xlu0 %1142
        %1144 = vrot.lane.b32.xlu0 %v1081, 112
        %v1145 = vpop.permute.xlu0 %1144
        %1146 = vrot.lane.b32.xlu0 %v1083, 112
        %v1147 = vpop.permute.xlu0 %1146
        %v1180 = vrot.slane %v250, 4
        %v1181 = vrot.slane %v251, 4
        %v1182 = vsel %vm481, %v1180, %v1181
        %v1183 = vrot.slane %v252, 4
        %v1184 = vsel %vm481, %v1181, %v1183
        %v1185 = vrot.slane %v253, 4
        %v1186 = vrot.slane %v254, 4
        %v1187 = vsel %vm481, %v1185, %v1186
        %v1188 = vrot.slane %v255, 4
        %v1189 = vsel %vm481, %v1186, %v1188
        %vm1190 = vcmask 130048
        %v1191 = vsel %vm1190, %v196, %v386
        %v1192 = vsel %vm1190, %v197, %v388
        %v1193 = vsel %vm1190, %v199, %v390
        %v1194 = vsel %vm1190, %v200, %v392
        %v1195 = vsel %vm1190, %v202, %v394
        %v1196 = vsel %vm1190, %v203, %v396
        %v1197 = vsel %vm1190, %v205, %v398
        %v1198 = vsel %vm1190, %v206, %v400
        %v1199 = vsel %vm1190, %v208, %v402
        %v1200 = vsel %vm1190, %v209, %v404
        %v1201 = vsel %vm1190, %v211, %v406
        %v1202 = vsel %vm1190, %v212, %v408
        %v1203 = vsel %vm1190, %v214, %v410
        %v1204 = vsel %vm1190, %v215, %v412
        %v1205 = vsel %vm1190, %v217, %v414
        %v1206 = vsel %vm1190, %v218, %v416
        %v1207 = vsel %vm1190, %v220, %v418
        %v1208 = vsel %vm1190, %v221, %v420
        %v1209 = vsel %vm1190, %v223, %v422
        %v1210 = vsel %vm1190, %v224, %v424
        %v1211 = vsel %vm1190, %v226, %v426
        %v1212 = vsel %vm1190, %v227, %v428
        %v1213 = vsel %vm1190, %v229, %v430
        %v1214 = vsel %vm1190, %v230, %v432
        %v1215 = vsel %vm1190, %v232, %v434
        %v1216 = vsel %vm1190, %v233, %v436
        %v1217 = vsel %vm1190, %v235, %v438
        %v1218 = vsel %vm1190, %v236, %v440
        %v1219 = vsel %vm1190, %v238, %v442
        %v1220 = vsel %vm1190, %v239, %v444
        %v1221 = vsel %vm1190, %v241, %v446
        %v1222 = vsel %vm1190, %v242, %v448
        %vm1223 = vcmask 261120
        %v1224 = vsel %vm1223, %v1191, %v563
        %v1225 = vsel %vm1223, %v1192, %v565
        %v1226 = vsel %vm1223, %v1193, %v567
        %v1227 = vsel %vm1223, %v1194, %v569
        %v1228 = vsel %vm1223, %v1195, %v571
        %v1229 = vsel %vm1223, %v1196, %v573
        %v1230 = vsel %vm1223, %v1197, %v575
        %v1231 = vsel %vm1223, %v1198, %v577
        %v1232 = vsel %vm1223, %v1199, %v579
        %v1233 = vsel %vm1223, %v1200, %v581
        %v1234 = vsel %vm1223, %v1201, %v583
        %v1235 = vsel %vm1223, %v1202, %v585
        %v1236 = vsel %vm1223, %v1203, %v587
        %v1237 = vsel %vm1223, %v1204, %v589
        %v1238 = vsel %vm1223, %v1205, %v591
        %v1239 = vsel %vm1223, %v1206, %v593
        %v1240 = vsel %vm1223, %v1207, %v595
        %v1241 = vsel %vm1223, %v1208, %v597
        %v1242 = vsel %vm1223, %v1209, %v599
        %v1243 = vsel %vm1223, %v1210, %v601
        %v1244 = vsel %vm1223, %v1211, %v603
        %v1245 = vsel %vm1223, %v1212, %v605
        %v1246 = vsel %vm1223, %v1213, %v607
        %v1247 = vsel %vm1223, %v1214, %v609
        %v1248 = vsel %vm1223, %v1215, %v611
        %v1249 = vsel %vm1223, %v1216, %v613
        %v1250 = vsel %vm1223, %v1217, %v615
        %v1251 = vsel %vm1223, %v1218, %v617
        %v1252 = vsel %vm1223, %v1219, %v619
        %v1253 = vsel %vm1223, %v1220, %v621
        %v1254 = vsel %vm1223, %v1221, %v623
        %v1255 = vsel %vm1223, %v1222, %v625
        %vm1256 = vcmask 392192
        %v1257 = vsel %vm1256, %v1224, %v663
        %v1258 = vsel %vm1256, %v1225, %v665
        %v1259 = vsel %vm1256, %v1226, %v667
        %v1260 = vsel %vm1256, %v1227, %v669
        %v1261 = vsel %vm1256, %v1228, %v671
        %v1262 = vsel %vm1256, %v1229, %v673
        %v1263 = vsel %vm1256, %v1230, %v675
        %v1264 = vsel %vm1256, %v1231, %v677
        %v1265 = vsel %vm1256, %v1232, %v679
        %v1266 = vsel %vm1256, %v1233, %v681
        %v1267 = vsel %vm1256, %v1234, %v683
        %v1268 = vsel %vm1256, %v1235, %v685
        %v1269 = vsel %vm1256, %v1236, %v687
        %v1270 = vsel %vm1256, %v1237, %v689
        %v1271 = vsel %vm1256, %v1238, %v691
        %v1272 = vsel %vm1256, %v1239, %v693
        %v1273 = vsel %vm1256, %v1240, %v695
        %v1274 = vsel %vm1256, %v1241, %v697
        %v1275 = vsel %vm1256, %v1242, %v699
        %v1276 = vsel %vm1256, %v1243, %v701
        %v1277 = vsel %vm1256, %v1244, %v703
        %v1278 = vsel %vm1256, %v1245, %v705
        %v1279 = vsel %vm1256, %v1246, %v707
        %v1280 = vsel %vm1256, %v1247, %v709
        %v1281 = vsel %vm1256, %v1248, %v711
        %v1282 = vsel %vm1256, %v1249, %v713
        %v1283 = vsel %vm1256, %v1250, %v715
        %v1284 = vsel %vm1256, %v1251, %v717
        %v1285 = vsel %vm1256, %v1252, %v719
        %v1286 = vsel %vm1256, %v1253, %v721
        %v1287 = vsel %vm1256, %v1254, %v723
        %v1288 = vsel %vm1256, %v1255, %v725
        %vm1289 = vcmask 523264
        %v1290 = vsel %vm1289, %v1257, %v771
        %v1291 = vsel %vm1289, %v1258, %v773
        %v1292 = vsel %vm1289, %v1259, %v775
        %v1293 = vsel %vm1289, %v1260, %v777
        %v1294 = vsel %vm1289, %v1261, %v779
        %v1295 = vsel %vm1289, %v1262, %v781
        %v1296 = vsel %vm1289, %v1263, %v783
        %v1297 = vsel %vm1289, %v1264, %v785
        %v1298 = vsel %vm1289, %v1265, %v787
        %v1299 = vsel %vm1289, %v1266, %v789
        %v1300 = vsel %vm1289, %v1267, %v791
        %v1301 = vsel %vm1289, %v1268, %v793
        %v1302 = vsel %vm1289, %v1269, %v795
        %v1303 = vsel %vm1289, %v1270, %v797
        %v1304 = vsel %vm1289, %v1271, %v799
        %v1305 = vsel %vm1289, %v1272, %v801
        %v1306 = vsel %vm1289, %v1273, %v803
        %v1307 = vsel %vm1289, %v1274, %v805
        %v1308 = vsel %vm1289, %v1275, %v807
        %v1309 = vsel %vm1289, %v1276, %v809
        %v1310 = vsel %vm1289, %v1277, %v811
        %v1311 = vsel %vm1289, %v1278, %v813
        %v1312 = vsel %vm1289, %v1279, %v815
        %v1313 = vsel %vm1289, %v1280, %v817
        %v1314 = vsel %vm1289, %v1281, %v819
        %v1315 = vsel %vm1289, %v1282, %v821
        %v1316 = vsel %vm1289, %v1283, %v823
        %v1317 = vsel %vm1289, %v1284, %v825
        %v1318 = vsel %vm1289, %v1285, %v827
        %v1319 = vsel %vm1289, %v1286, %v829
        %v1320 = vsel %vm1289, %v1287, %v831
        %v1321 = vsel %vm1289, %v1288, %v833
        %vm1322 = vcmask 654336
        %v1323 = vsel %vm1322, %v1290, %v877
        %v1324 = vsel %vm1322, %v1291, %v879
        %v1325 = vsel %vm1322, %v1292, %v881
        %v1326 = vsel %vm1322, %v1293, %v883
        %v1327 = vsel %vm1322, %v1294, %v885
        %v1328 = vsel %vm1322, %v1295, %v887
        %v1329 = vsel %vm1322, %v1296, %v889
        %v1330 = vsel %vm1322, %v1297, %v891
        %v1331 = vsel %vm1322, %v1298, %v893
        %v1332 = vsel %vm1322, %v1299, %v895
        %v1333 = vsel %vm1322, %v1300, %v897
        %v1334 = vsel %vm1322, %v1301, %v899
        %v1335 = vsel %vm1322, %v1302, %v901
        %v1336 = vsel %vm1322, %v1303, %v903
        %v1337 = vsel %vm1322, %v1304, %v905
        %v1338 = vsel %vm1322, %v1305, %v907
        %v1339 = vsel %vm1322, %v1306, %v909
        %v1340 = vsel %vm1322, %v1307, %v911
        %v1341 = vsel %vm1322, %v1308, %v913
        %v1342 = vsel %vm1322, %v1309, %v915
        %v1343 = vsel %vm1322, %v1310, %v917
        %v1344 = vsel %vm1322, %v1311, %v919
        %v1345 = vsel %vm1322, %v1312, %v921
        %v1346 = vsel %vm1322, %v1313, %v923
        %v1347 = vsel %vm1322, %v1314, %v925
        %v1348 = vsel %vm1322, %v1315, %v927
        %v1349 = vsel %vm1322, %v1316, %v929
        %v1350 = vsel %vm1322, %v1317, %v931
        %v1351 = vsel %vm1322, %v1318, %v933
        %v1352 = vsel %vm1322, %v1319, %v935
        %v1353 = vsel %vm1322, %v1320, %v937
        %v1354 = vsel %vm1322, %v1321, %v939
        %vm1355 = vcmask 785408
        %v1356 = vsel %vm1355, %v1323, %v977
        %v1357 = vsel %vm1355, %v1324, %v979
        %v1358 = vsel %vm1355, %v1325, %v981
        %v1359 = vsel %vm1355, %v1326, %v983
        %v1360 = vsel %vm1355, %v1327, %v985
        %v1361 = vsel %vm1355, %v1328, %v987
        %v1362 = vsel %vm1355, %v1329, %v989
        %v1363 = vsel %vm1355, %v1330, %v991
        %v1364 = vsel %vm1355, %v1331, %v993
        %v1365 = vsel %vm1355, %v1332, %v995
        %v1366 = vsel %vm1355, %v1333, %v997
        %v1367 = vsel %vm1355, %v1334, %v999
        %v1368 = vsel %vm1355, %v1335, %v1001
        %v1369 = vsel %vm1355, %v1336, %v1003
        %v1370 = vsel %vm1355, %v1337, %v1005
        %v1371 = vsel %vm1355, %v1338, %v1007
        %v1372 = vsel %vm1355, %v1339, %v1009
        %v1373 = vsel %vm1355, %v1340, %v1011
        %v1374 = vsel %vm1355, %v1341, %v1013
        %v1375 = vsel %vm1355, %v1342, %v1015
        %v1376 = vsel %vm1355, %v1343, %v1017
        %v1377 = vsel %vm1355, %v1344, %v1019
        %v1378 = vsel %vm1355, %v1345, %v1021
        %v1379 = vsel %vm1355, %v1346, %v1023
        %v1380 = vsel %vm1355, %v1347, %v1025
        %v1381 = vsel %vm1355, %v1348, %v1027
        %v1382 = vsel %vm1355, %v1349, %v1029
        %v1383 = vsel %vm1355, %v1350, %v1031
        %v1384 = vsel %vm1355, %v1351, %v1033
        %v1385 = vsel %vm1355, %v1352, %v1035
        %v1386 = vsel %vm1355, %v1353, %v1037
        %v1387 = vsel %vm1355, %v1354, %v1039
        %vm1388 = vcmask 916480
        %v1389 = vsel %vm1388, %v1356, %v1085
        %v1390 = vsel %vm1388, %v1357, %v1087
        %v1391 = vsel %vm1388, %v1358, %v1089
        %v1392 = vsel %vm1388, %v1359, %v1091
        %v1393 = vsel %vm1388, %v1360, %v1093
        %v1394 = vsel %vm1388, %v1361, %v1095
        %v1395 = vsel %vm1388, %v1362, %v1097
        %v1396 = vsel %vm1388, %v1363, %v1099
        %v1397 = vsel %vm1388, %v1364, %v1101
        %v1398 = vsel %vm1388, %v1365, %v1103
        %v1399 = vsel %vm1388, %v1366, %v1105
        %v1400 = vsel %vm1388, %v1367, %v1107
        %v1401 = vsel %vm1388, %v1368, %v1109
        %v1402 = vsel %vm1388, %v1369, %v1111
        %v1403 = vsel %vm1388, %v1370, %v1113
        %v1404 = vsel %vm1388, %v1371, %v1115
        %v1405 = vsel %vm1388, %v1372, %v1117
        %v1406 = vsel %vm1388, %v1373, %v1119
        %v1407 = vsel %vm1388, %v1374, %v1121
        %v1408 = vsel %vm1388, %v1375, %v1123
        %v1409 = vsel %vm1388, %v1376, %v1125
        %v1410 = vsel %vm1388, %v1377, %v1127
        %v1411 = vsel %vm1388, %v1378, %v1129
        %v1412 = vsel %vm1388, %v1379, %v1131
        %v1413 = vsel %vm1388, %v1380, %v1133
        %v1414 = vsel %vm1388, %v1381, %v1135
        %v1415 = vsel %vm1388, %v1382, %v1137
        %v1416 = vsel %vm1388, %v1383, %v1139
        %v1417 = vsel %vm1388, %v1384, %v1141
        %v1418 = vsel %vm1388, %v1385, %v1143
        %v1419 = vsel %vm1388, %v1386, %v1145
        %v1420 = vsel %vm1388, %v1387, %v1147
        %v1421 = vld [vmem:[%s1] sm:$0xff]
        %v1422 = vld [vmem:[%s1 + $0x8] sm:$0xff]
        %v1423 = vld [vmem:[%s1 + $0x10] sm:$0xff]
        %v1424 = vld [vmem:[%s1 + $0x18] sm:$0xff]
        %v1425 = vld [vmem:[%s1 + $0x20] sm:$0xff]
        %v1426 = vld [vmem:[%s1 + $0x28] sm:$0xff]
        %v1427 = vld [vmem:[%s1 + $0x30] sm:$0xff]
        %v1428 = vld [vmem:[%s1 + $0x38] sm:$0xff]
        %v1429 = vld [vmem:[%s1 + $0x40] sm:$0xff]
        %v1430 = vld [vmem:[%s1 + $0x48] sm:$0xff]
        %v1431 = vld [vmem:[%s1 + $0x50] sm:$0xff]
        %v1432 = vld [vmem:[%s1 + $0x58] sm:$0xff]
        %v1433 = vld [vmem:[%s1 + $0x60] sm:$0xff]
        %v1434 = vld [vmem:[%s1 + $0x68] sm:$0xff]
        %v1435 = vld [vmem:[%s1 + $0x70] sm:$0xff]
        %v1436 = vld [vmem:[%s1 + $0x78] sm:$0xff]
        %v1437 = vld [vmem:[%s1 + $0x80] sm:$0xff]
        %v1438 = vld [vmem:[%s1 + $0x88] sm:$0xff]
        %v1439 = vsel %vm1190, %v504, 0
        %v1441 = vsel %vm1190, %v506, 0
        %v1443 = vsel %vm1190, %v509, 0
        %v1445 = vsel %vm1190, %v511, 0
        %v1447 = vsel %vm1190, %v514, 0
        %v1449 = vsel %vm1190, %v516, 0
        %v1451 = vsel %vm1190, %v519, 0
        %v1453 = vsel %vm1190, %v521, 0
        %v1455 = vsel %vm1190, %v524, 0
        %v1457 = vsel %vm1190, %v526, 0
        %v1459 = vsel %vm1190, %v529, 0
        %v1461 = vsel %vm1190, %v531, 0
        %v1463 = vsel %vm1190, %v534, 0
        %v1465 = vsel %vm1190, %v536, 0
        %v1467 = vsel %vm1190, %v539, 0
        %v1469 = vsel %vm1190, %v541, 0
        %v1471 = vsel %vm1190, %v544, 0
        %v1473 = vsel %vm1190, %v546, 0
        %v1475 = vsel %vm1190, %v549, 0
        %v1477 = vsel %vm1190, %v551, 0
        %v1479 = vsel %vm1190, %v554, 0
        %v1481 = vsel %vm1190, %v556, 0
        %v1483 = vsel %vm1190, %v559, 0
        %v1485 = vsel %vm1190, %v561, 0
        %v1487 = vsel %vm1190, %v868, 0
        %v1489 = vsel %vm1190, %v870, 0
        %v1491 = vsel %vm1190, %v873, 0
        %v1493 = vsel %vm1190, %v875, 0
        %v1495 = vsel %vm1190, %v1182, 0
        %v1497 = vsel %vm1190, %v1184, 0
        %v1499 = vsel %vm1190, %v1187, 0
        %v1501 = vsel %vm1190, %v1189, 0
        %1503 = vmatprep.subr.mxu0 0.0
        %1504 = vmatpush1.msra.mxu0 %v1421
        %1505 = vmatprep.subr.mxu0 0.0
        %1506 = vmatpush1.msra.mxu0 %v1422
        %1507 = vmatprep.subr.mxu0 0.0
        %1508 = vmatpush1.msra.mxu0 %v1423
        %1509 = vmatprep.subr.mxu0 0.0
        %1510 = vmatpush1.msra.mxu0 %v1424
        %1511 = vmatprep.subr.mxu0 0.0
        %1512 = vmatpush1.msra.mxu0 %v1425
        %1513 = vmatprep.subr.mxu0 0.0
        %1514 = vmatpush1.msra.mxu0 %v1426
        %1515 = vmatprep.subr.mxu0 0.0
        %1516 = vmatpush1.msra.mxu0 %v1427
        %1517 = vmatprep.subr.mxu0 0.0
        %1518 = vmatpush1.msra.mxu0 %v1428
        %1519 = vmatprep.subr.mxu0 0.0
        %1520 = vmatpush1.msra.mxu0 %v1429
        %1521 = vmatprep.subr.mxu0 0.0
        %1522 = vmatpush1.msra.mxu0 %v1430
        %1523 = vmatprep.subr.mxu0 0.0
        %1524 = vmatpush1.msra.mxu0 %v1431
        %1525 = vmatprep.subr.mxu0 0.0
        %1526 = vmatpush1.msra.mxu0 %v1432
        %1527 = vmatprep.subr.mxu0 0.0
        %1528 = vmatpush1.msra.mxu0 %v1433
        %1529 = vmatprep.subr.mxu0 0.0
        %1530 = vmatpush1.msra.mxu0 %v1434
        %1531 = vmatprep.subr.mxu0 0.0
        %1532 = vmatpush1.msra.mxu0 %v1435
        %1533 = vmatprep.subr.mxu0 0.0
        %1534 = vmatpush1.msra.mxu0 %v1436
        %1535 = vmatprep.subr.mxu0 0.0
        %1536 = vmatpush1.msra.mxu0 %v1437
        %1537 = vmatprep.subr.mxu0 0.0
        %1538 = vmatpush1.msra.mxu0 %v1438
        %1539 = vmatprep.subr.mxu0 0.0
        %1540 = vmatpush1.msra.mxu0 0.0
        %1541 = vmatprep.subr.mxu0 0.0
        %1542 = vmatpush1.msra.mxu0 0.0
        %1543 = vmatprep.subr.mxu0 0.0
        %1544 = vmatpush1.msra.mxu0 0.0
        %1545 = vmatprep.subr.mxu0 0.0
        %1546 = vmatpush1.msra.mxu0 0.0
        %1547 = vmatprep.subr.mxu0 0.0
        %1548 = vmatpush1.msra.mxu0 0.0
        %1549 = vmatprep.subr.mxu0 0.0
        %1550 = vmatpush1.msra.mxu0 0.0
        %1551 = vmatprep.subr.mxu0 0.0
        %1552 = vmatpush1.msra.mxu0 0.0
        %1553 = vmatprep.subr.mxu0 0.0
        %1554 = vmatpush1.msra.mxu0 0.0
        %1555 = vmatprep.subr.mxu0 0.0
        %1556 = vmatpush1.msra.mxu0 0.0
        %1557 = vmatprep.subr.mxu0 0.0
        %1558 = vmatpush1.msra.mxu0 0.0
        %1559 = vmatprep.subr.mxu0 0.0
        %1560 = vmatpush1.msra.mxu0 0.0
        %1561 = vmatprep.subr.mxu0 0.0
        %1562 = vmatpush1.msra.mxu0 0.0
        %1563 = vmatprep.subr.mxu0 0.0
        %1564 = vmatpush1.msra.mxu0 0.0
        %1565 = vmatprep.subr.mxu0 0.0
        %1566 = vmatpush1.msra.mxu0 0.0
        %1567 = vmatprep.mubr.f32.mxu0 %v1439
        %1568 = vmatmul.mubr.f32.gmra.mrb[0].mxu0 %v1389
        %v1569 = vpop.f32.mrb[0].mxu0
        %v1570 = vadd.f32 0.0, %v1569
        %v1571 = vpop.f32.mrb[0].mxu0
        %1572 = vmatprep.mubr.f32.mxu0 %v1441
        %1573 = vmatmul.mubr.f32.gmra.mrb[0].mxu0 %v1390
        %v1574 = vpop.f32.mrb[0].mxu0
        %v1575 = vadd.f32 0.0, %v1574
        %v1576 = vpop.f32.mrb[0].mxu0
        %1577 = vmatprep.mubr.f32.mxu0 %v1443
        %1578 = vmatmul.mubr.f32.gmra.mrb[0].mxu0 %v1391
        %v1579 = vpop.f32.mrb[0].mxu0
        %v1580 = vadd.f32 0.0, %v1579
        %v1581 = vpop.f32.mrb[0].mxu0
        %1582 = vmatprep.mubr.f32.mxu0 %v1445
        %1583 = vmatmul.mubr.f32.gmra.mrb[0].mxu0 %v1392
        %v1584 = vpop.f32.mrb[0].mxu0
        %v1585 = vadd.f32 0.0, %v1584
        %v1586 = vpop.f32.mrb[0].mxu0
        %1587 = vmatprep.mubr.f32.mxu0 %v1447
        %1588 = vmatmul.mubr.f32.gmra.mrb[0].mxu0 %v1393
        %v1589 = vpop.f32.mrb[0].mxu0
        %v1590 = vadd.f32 0.0, %v1589
        %v1591 = vpop.f32.mrb[0].mxu0
        %1592 = vmatprep.mubr.f32.mxu0 %v1449
        %1593 = vmatmul.mubr.f32.gmra.mrb[0].mxu0 %v1394
        %v1594 = vpop.f32.mrb[0].mxu0
        %v1595 = vadd.f32 0.0, %v1594
        %v1596 = vpop.f32.mrb[0].mxu0
        %1597 = vmatprep.mubr.f32.mxu0 %v1451
        %1598 = vmatmul.mubr.f32.gmra.mrb[0].mxu0 %v1395
        %v1599 = vpop.f32.mrb[0].mxu0
        %v1600 = vadd.f32 0.0, %v1599
        %v1601 = vpop.f32.mrb[0].mxu0
        %1602 = vmatprep.mubr.f32.mxu0 %v1453
        %1603 = vmatmul.mubr.f32.gmra.mrb[0].mxu0 %v1396
        %v1604 = vpop.f32.mrb[0].mxu0
        %v1605 = vadd.f32 0.0, %v1604
        %v1606 = vpop.f32.mrb[0].mxu0
        %1607 = vmatprep.mubr.f32.mxu0 %v1455
        %1608 = vmatmul.mubr.f32.gmra.mrb[0].mxu0 %v1397
        %v1609 = vpop.f32.mrb[0].mxu0
        %v1610 = vadd.f32 0.0, %v1609
        %v1611 = vpop.f32.mrb[0].mxu0
        %1612 = vmatprep.mubr.f32.mxu0 %v1457
        %1613 = vmatmul.mubr.f32.gmra.mrb[0].mxu0 %v1398
        %v1614 = vpop.f32.mrb[0].mxu0
        %v1615 = vadd.f32 0.0, %v1614
        %v1616 = vpop.f32.mrb[0].mxu0
        %1617 = vmatprep.mubr.f32.mxu0 %v1459
        %1618 = vmatmul.mubr.f32.gmra.mrb[0].mxu0 %v1399
        %v1619 = vpop.f32.mrb[0].mxu0
        %v1620 = vadd.f32 0.0, %v1619
        %v1621 = vpop.f32.mrb[0].mxu0
        %1622 = vmatprep.mubr.f32.mxu0 %v1461
        %1623 = vmatmul.mubr.f32.gmra.mrb[0].mxu0 %v1400
        %v1624 = vpop.f32.mrb[0].mxu0
        %v1625 = vadd.f32 0.0, %v1624
        %v1626 = vpop.f32.mrb[0].mxu0
        %1627 = vmatprep.mubr.f32.mxu0 %v1463
        %1628 = vmatmul.mubr.f32.gmra.mrb[0].mxu0 %v1401
        %v1629 = vpop.f32.mrb[0].mxu0
        %v1630 = vadd.f32 0.0, %v1629
        %v1631 = vpop.f32.mrb[0].mxu0
        %1632 = vmatprep.mubr.f32.mxu0 %v1465
        %1633 = vmatmul.mubr.f32.gmra.mrb[0].mxu0 %v1402
        %v1634 = vpop.f32.mrb[0].mxu0
        %v1635 = vadd.f32 0.0, %v1634
        %v1636 = vpop.f32.mrb[0].mxu0
        %1637 = vmatprep.mubr.f32.mxu0 %v1467
        %1638 = vmatmul.mubr.f32.gmra.mrb[0].mxu0 %v1403
        %v1639 = vpop.f32.mrb[0].mxu0
        %v1640 = vadd.f32 0.0, %v1639
        %v1641 = vpop.f32.mrb[0].mxu0
        %1642 = vmatprep.mubr.f32.mxu0 %v1469
        %1643 = vmatmul.mubr.f32.gmra.mrb[0].mxu0 %v1404
        %v1644 = vpop.f32.mrb[0].mxu0
        %v1645 = vadd.f32 0.0, %v1644
        %v1646 = vpop.f32.mrb[0].mxu0
        %1647 = vmatprep.mubr.f32.mxu0 %v1471
        %1648 = vmatmul.mubr.f32.gmra.mrb[0].mxu0 %v1405
        %v1649 = vpop.f32.mrb[0].mxu0
        %v1650 = vadd.f32 0.0, %v1649
        %v1651 = vpop.f32.mrb[0].mxu0
        %1652 = vmatprep.mubr.f32.mxu0 %v1473
        %1653 = vmatmul.mubr.f32.gmra.mrb[0].mxu0 %v1406
        %v1654 = vpop.f32.mrb[0].mxu0
        %v1655 = vadd.f32 0.0, %v1654
        %v1656 = vpop.f32.mrb[0].mxu0
        %1657 = vmatprep.mubr.f32.mxu0 %v1475
        %1658 = vmatmul.mubr.f32.gmra.mrb[0].mxu0 %v1407
        %v1659 = vpop.f32.mrb[0].mxu0
        %v1660 = vadd.f32 0.0, %v1659
        %v1661 = vpop.f32.mrb[0].mxu0
        %1662 = vmatprep.mubr.f32.mxu0 %v1477
        %1663 = vmatmul.mubr.f32.gmra.mrb[0].mxu0 %v1408
        %v1664 = vpop.f32.mrb[0].mxu0
        %v1665 = vadd.f32 0.0, %v1664
        %v1666 = vpop.f32.mrb[0].mxu0
        %1667 = vmatprep.mubr.f32.mxu0 %v1479
        %1668 = vmatmul.mubr.f32.gmra.mrb[0].mxu0 %v1409
        %v1669 = vpop.f32.mrb[0].mxu0
        %v1670 = vadd.f32 0.0, %v1669
        %v1671 = vpop.f32.mrb[0].mxu0
        %1672 = vmatprep.mubr.f32.mxu0 %v1481
        %1673 = vmatmul.mubr.f32.gmra.mrb[0].mxu0 %v1410
        %v1674 = vpop.f32.mrb[0].mxu0
        %v1675 = vadd.f32 0.0, %v1674
        %v1676 = vpop.f32.mrb[0].mxu0
        %1677 = vmatprep.mubr.f32.mxu0 %v1483
        %1678 = vmatmul.mubr.f32.gmra.mrb[0].mxu0 %v1411
        %v1679 = vpop.f32.mrb[0].mxu0
        %v1680 = vadd.f32 0.0, %v1679
        %v1681 = vpop.f32.mrb[0].mxu0
        %1682 = vmatprep.mubr.f32.mxu0 %v1485
        %1683 = vmatmul.mubr.f32.gmra.mrb[0].mxu0 %v1412
        %v1684 = vpop.f32.mrb[0].mxu0
        %v1685 = vadd.f32 0.0, %v1684
        %v1686 = vpop.f32.mrb[0].mxu0
        %1687 = vmatprep.mubr.f32.mxu0 %v1487
        %1688 = vmatmul.mubr.f32.gmra.mrb[0].mxu0 %v1413
        %v1689 = vpop.f32.mrb[0].mxu0
        %v1690 = vadd.f32 0.0, %v1689
        %v1691 = vpop.f32.mrb[0].mxu0
        %1692 = vmatprep.mubr.f32.mxu0 %v1489
        %1693 = vmatmul.mubr.f32.gmra.mrb[0].mxu0 %v1414
        %v1694 = vpop.f32.mrb[0].mxu0
        %v1695 = vadd.f32 0.0, %v1694
        %v1696 = vpop.f32.mrb[0].mxu0
        %1697 = vmatprep.mubr.f32.mxu0 %v1491
        %1698 = vmatmul.mubr.f32.gmra.mrb[0].mxu0 %v1415
        %v1699 = vpop.f32.mrb[0].mxu0
        %v1700 = vadd.f32 0.0, %v1699
        %v1701 = vpop.f32.mrb[0].mxu0
        %1702 = vmatprep.mubr.f32.mxu0 %v1493
        %1703 = vmatmul.mubr.f32.gmra.mrb[0].mxu0 %v1416
        %v1704 = vpop.f32.mrb[0].mxu0
        %v1705 = vadd.f32 0.0, %v1704
        %v1706 = vpop.f32.mrb[0].mxu0
        %1707 = vmatprep.mubr.f32.mxu0 %v1495
        %1708 = vmatmul.mubr.f32.gmra.mrb[0].mxu0 %v1417
        %v1709 = vpop.f32.mrb[0].mxu0
        %v1710 = vadd.f32 0.0, %v1709
        %v1711 = vpop.f32.mrb[0].mxu0
        %1712 = vmatprep.mubr.f32.mxu0 %v1497
        %1713 = vmatmul.mubr.f32.gmra.mrb[0].mxu0 %v1418
        %v1714 = vpop.f32.mrb[0].mxu0
        %v1715 = vadd.f32 0.0, %v1714
        %v1716 = vpop.f32.mrb[0].mxu0
        %1717 = vmatprep.mubr.f32.mxu0 %v1499
        %1718 = vmatmul.mubr.f32.gmra.mrb[0].mxu0 %v1419
        %v1719 = vpop.f32.mrb[0].mxu0
        %v1720 = vadd.f32 0.0, %v1719
        %v1721 = vpop.f32.mrb[0].mxu0
        %1722 = vmatprep.mubr.f32.mxu0 %v1501
        %1723 = vmatmul.mubr.f32.gmra.mrb[0].mxu0 %v1420
        %v1724 = vpop.f32.mrb[0].mxu0
        %v1725 = vadd.f32 0.0, %v1724
        %v1726 = vpop.f32.mrb[0].mxu0
        %1727 = vdwg.mxu0
        %v1728 = vld [vmem:[%s2] sm:$0x1]
        %v1730 = vlaneseq
        %v1731 = vshrl.u32 %v1730, 7
        %v1732 = vsub.s32 0, %v1731
        %v1733 = vrot.slane %v1728, %v1732
        %v1735 = vmul.f32 %v1570, %v1733
        %v1736 = vmul.f32 %v1575, %v1733
        %v1737 = vmul.f32 %v1580, %v1733
        %v1738 = vmul.f32 %v1585, %v1733
        %v1739 = vmul.f32 %v1590, %v1733
        %v1740 = vmul.f32 %v1595, %v1733
        %v1741 = vmul.f32 %v1600, %v1733
        %v1742 = vmul.f32 %v1605, %v1733
        %v1743 = vmul.f32 %v1610, %v1733
        %v1744 = vmul.f32 %v1615, %v1733
        %v1745 = vmul.f32 %v1620, %v1733
        %v1746 = vmul.f32 %v1625, %v1733
        %v1747 = vmul.f32 %v1630, %v1733
        %v1748 = vmul.f32 %v1635, %v1733
        %v1749 = vmul.f32 %v1640, %v1733
        %v1750 = vmul.f32 %v1645, %v1733
        %v1751 = vmul.f32 %v1650, %v1733
        %v1752 = vmul.f32 %v1655, %v1733
        %v1753 = vmul.f32 %v1660, %v1733
        %v1754 = vmul.f32 %v1665, %v1733
        %v1755 = vmul.f32 %v1670, %v1733
        %v1756 = vmul.f32 %v1675, %v1733
        %v1757 = vmul.f32 %v1680, %v1733
        %v1758 = vmul.f32 %v1685, %v1733
        %v1759 = vmul.f32 %v1690, %v1733
        %v1760 = vmul.f32 %v1695, %v1733
        %v1761 = vmul.f32 %v1700, %v1733
        %v1762 = vmul.f32 %v1705, %v1733
        %v1763 = vmul.f32 %v1710, %v1733
        %v1764 = vmul.f32 %v1715, %v1733
        %v1765 = vmul.f32 %v1720, %v1733
        %v1766 = vmul.f32 %v1725, %v1733
        %v1767 = vld [vmem:[%s3] sm:$0x1]
        %v1769 = vlaneseq
        %v1770 = vshrl.u32 %v1769, 7
        %v1771 = vsub.s32 0, %v1770
        %v1772 = vrot.slane %v1767, %v1771
        %v1774 = vadd.f32 %v1735, %v1772
        %v1775 = vadd.f32 %v1736, %v1772
        %v1776 = vadd.f32 %v1737, %v1772
        %v1777 = vadd.f32 %v1738, %v1772
        %v1778 = vadd.f32 %v1739, %v1772
        %v1779 = vadd.f32 %v1740, %v1772
        %v1780 = vadd.f32 %v1741, %v1772
        %v1781 = vadd.f32 %v1742, %v1772
        %v1782 = vadd.f32 %v1743, %v1772
        %v1783 = vadd.f32 %v1744, %v1772
        %v1784 = vadd.f32 %v1745, %v1772
        %v1785 = vadd.f32 %v1746, %v1772
        %v1786 = vadd.f32 %v1747, %v1772
        %v1787 = vadd.f32 %v1748, %v1772
        %v1788 = vadd.f32 %v1749, %v1772
        %v1789 = vadd.f32 %v1750, %v1772
        %v1790 = vadd.f32 %v1751, %v1772
        %v1791 = vadd.f32 %v1752, %v1772
        %v1792 = vadd.f32 %v1753, %v1772
        %v1793 = vadd.f32 %v1754, %v1772
        %v1794 = vadd.f32 %v1755, %v1772
        %v1795 = vadd.f32 %v1756, %v1772
        %v1796 = vadd.f32 %v1757, %v1772
        %v1797 = vadd.f32 %v1758, %v1772
        %v1798 = vadd.f32 %v1759, %v1772
        %v1799 = vadd.f32 %v1760, %v1772
        %v1800 = vadd.f32 %v1761, %v1772
        %v1801 = vadd.f32 %v1762, %v1772
        %v1802 = vadd.f32 %v1763, %v1772
        %v1803 = vadd.f32 %v1764, %v1772
        %v1804 = vadd.f32 %v1765, %v1772
        %v1805 = vadd.f32 %v1766, %v1772
        %1806 = vst [vmem:[%s190] sm:$0xff] %v1774
        %1807 = vst [vmem:[%s190 + $0x8] sm:$0xff] %v1775
        %1808 = vst [vmem:[%s190 + $0x10] sm:$0xff] %v1776
        %1809 = vst [vmem:[%s190 + $0x18] sm:$0xff] %v1777
        %1810 = vst [vmem:[%s190 + $0x20] sm:$0xff] %v1778
        %1811 = vst [vmem:[%s190 + $0x28] sm:$0xff] %v1779
        %1812 = vst [vmem:[%s190 + $0x30] sm:$0xff] %v1780
        %1813 = vst [vmem:[%s190 + $0x38] sm:$0xff] %v1781
        %1814 = vst [vmem:[%s190 + $0x40] sm:$0xff] %v1782
        %1815 = vst [vmem:[%s190 + $0x48] sm:$0xff] %v1783
        %1816 = vst [vmem:[%s190 + $0x50] sm:$0xff] %v1784
        %1817 = vst [vmem:[%s190 + $0x58] sm:$0xff] %v1785
        %1818 = vst [vmem:[%s190 + $0x60] sm:$0xff] %v1786
        %1819 = vst [vmem:[%s190 + $0x68] sm:$0xff] %v1787
        %1820 = vst [vmem:[%s190 + $0x70] sm:$0xff] %v1788
        %1821 = vst [vmem:[%s190 + $0x78] sm:$0xff] %v1789
        %1822 = vst [vmem:[%s190 + $0x80] sm:$0xff] %v1790
        %1823 = vst [vmem:[%s190 + $0x88] sm:$0xff] %v1791
        %1824 = vst [vmem:[%s190 + $0x90] sm:$0xff] %v1792
        %1825 = vst [vmem:[%s190 + $0x98] sm:$0xff] %v1793
        %1826 = vst [vmem:[%s190 + $0xa0] sm:$0xff] %v1794
        %1827 = vst [vmem:[%s190 + $0xa8] sm:$0xff] %v1795
        %1828 = vst [vmem:[%s190 + $0xb0] sm:$0xff] %v1796
        %1829 = vst [vmem:[%s190 + $0xb8] sm:$0xff] %v1797
        %1830 = vst [vmem:[%s190 + $0xc0] sm:$0xff] %v1798
        %1831 = vst [vmem:[%s190 + $0xc8] sm:$0xff] %v1799
        %1832 = vst [vmem:[%s190 + $0xd0] sm:$0xff] %v1800
        %1833 = vst [vmem:[%s190 + $0xd8] sm:$0xff] %v1801
        %1834 = vst [vmem:[%s190 + $0xe0] sm:$0xff] %v1802
        %1835 = vst [vmem:[%s190 + $0xe8] sm:$0xff] %v1803
        %1836 = vst [vmem:[%s190 + $0xf0] sm:$0xff] %v1804
        %1837 = vst [vmem:[%s190 + $0xf8] sm:$0xff] %v1805
        %s1838 = sand.u32 %s115, 1
        %s1839 = scalar_lea.sflag [#allocation3], %s1838
        %s1840 = sand.u32 %s115, 1
        %s1841 = smul.addr %s1840, 256
        %s1842 = scalar_lea.vmem [#allocation2], %s1841
        // Predicated region
        $region37: #{tpu_custom_call.1} parent=35 // pred_check
          %p1843 = pneg %p125
        $region38: #{tpu_custom_call.1} parent=35 // pred_check_branch
          %1845 = sbr.rel (%p1843) target = $region40
        $region39: #{tpu_custom_call.1} parent=35 // pred_region
          %s1847 = ssub.s32 4096, 4096
          %1848 = vsyncadd %s1839, %s1847
          %s1849 = smul.addr %s18, 32
          %s1850 = smul.addr %s1849, 128
          %s1851 = scalar_lea.hbm %s4, %s1850
          %s1852 = sshll.u32 %s1842, 4
          %s1853 = int_to_ptr.vmem [resolvable:$true] %s1852
          %1858 = dma.vmem_to_hbm [thread:$0]  %s1853, 4096, %s1851, %s1839, 128, 128, 8
        $region40: #{tpu_custom_call.1} parent=35 // pred_fallthru
          _
      $region36: #{tpu_custom_call.1} parent=5 // pred_fallthru
        _
      %p1859 = scmp.le.s32.totalorder 2, %s13
      // Predicated region
      $region41: #{tpu_custom_call.1} parent=5 // pred_check
        %p1860 = pneg %p1859
      $region42: #{tpu_custom_call.1} parent=5 // pred_check_branch
        %1862 = sbr.rel (%p1860) target = $region44
      $region43: #{tpu_custom_call.1} parent=5 // pred_region
        %s1863 = ssub.s32 %s13, 2
        // Predicated region
        $region45: #{tpu_custom_call.1} parent=43 // pred_check
          %p1864 = pneg %p131
        $region46: #{tpu_custom_call.1} parent=43 // pred_check_branch
          %1866 = sbr.rel (%p1864) target = $region48
        $region47: #{tpu_custom_call.1} parent=43 // pred_region
          %s1867 = sand.u32 %s116, 1
          %s1868 = scalar_lea.sflag [#allocation3], %s1867
          %s1869 = sand.u32 %s116, 1
          %s1870 = smul.addr %s1869, 256
          %s1871 = scalar_lea.vmem [#allocation2], %s1870
          %1872 = dma.done %s1868, 4096
        $region48: #{tpu_custom_call.1} parent=43 // pred_fallthru
          _
      $region44: #{tpu_custom_call.1} parent=5 // pred_fallthru
        _
    $region6: #{tpu_custom_call.1} parent=1 // loop_footer
      %s17 = sadd.s32 1, %s13
    $region7: #{tpu_custom_call.1} parent=1 // loop_footer_branch
      %12 = sbr.rel target = $region3
    $region8: #{tpu_custom_call.1} parent=1 // loop_exit
      _
    %1873 = vsyncpa [#allocation3], 1
    %s1874 = scalar_lea.sflag [#allocation3], 1
    %1875 = vsyncpa %s1874, 1

</llo_original>
